<compile_context>
chip_gen: v7x
topology: tpu7x:2x2x1
jax: 0.10.0
libtpu: 0.0.40
codegen_flags: <defaults>
</compile_context>

<pallas_src>
import jax
import jax.numpy as jnp
from jax import lax
from jax.experimental import pallas as pl
from jax.experimental.pallas import tpu as pltpu

# --- static configuration (small shapes, consistent with the module) ---
BATCH = 2
SEQ = 64
DIM = 16
EXPANSION = 2
INNER = DIM * EXPANSION          # 32
KSIZE = 31
PAD = (KSIZE - 1) // 2           # get_padding(31) = 15
LN_EPS = 1e-5
BN_EPS = 1e-5
TOTAL = BATCH * SEQ              # 128 lanes


def _sigmoid_via_tanh(x):
    # sigmoid(x) = 0.5 * (1 + tanh(0.5 * x)) : single EUP tanh, no divide.
    return 0.5 * (1.0 + jnp.tanh(0.5 * x))


def conformer_conv_kernel(x_ref, w1_ref, b1_ref, dwtaps_ref, dwb_ref,
                          w2_ref, b2_ref, out_ref):
    # x_ref: (TOTAL, DIM) -- tokens on sublanes, channels on lanes.
    x = x_ref[...].astype(jnp.float32)

    # --- LayerNorm over channels (lane axis); gamma/beta are folded into the
    #     first pointwise conv, so only the normalization remains. ---
    mean = jnp.mean(x, axis=1, keepdims=True)                    # (T, 1)
    var = jnp.mean((x - mean) ** 2, axis=1, keepdims=True)       # (T, 1)
    h = (x - mean) * lax.rsqrt(var + LN_EPS)                     # (T, D)

    # --- pointwise Conv1d(dim -> 2*inner, k=1), fused with the layout change
    #     to channels-on-sublanes: p = W1' @ h^T via trans_b dot_general ---
    p = lax.dot_general(w1_ref[...], h,
                        dimension_numbers=(((1,), (1,)), ((), ())),
                        preferred_element_type=jnp.float32) + b1_ref[...]
    # p: (2*INNER, TOTAL) = (64, 128), lane-dense.

    # --- GLU along channels: clean sublane split at row INNER ---
    u = p[:INNER, :] * _sigmoid_via_tanh(p[INNER:, :])           # (I, T)

    # --- depthwise Conv1d(k=31, pad=15, groups=inner), BN(eval) folded.
    # Time runs along lanes; per-batch zero padding / cross-batch isolation /
    # wraparound are all handled by the pre-masked per-tap weight slabs
    # dwtaps_ref[k] (shape (I, T)).  Four partial accumulators break the
    # serial add chain so the VALU slots stay full. ---
    acc = [None, None, None, None]
    for k in range(KSIZE):                                       # static unroll
        j = k - PAD
        # y[t] = u[t + j]  ==  roll by (-j) mod TOTAL (pltpu.roll needs >= 0).
        shifted = u if j == 0 else pltpu.roll(u, shift=(-j) % TOTAL, axis=1)
        term = shifted * dwtaps_ref[k]
        s = k % 4
        acc[s] = term if acc[s] is None else acc[s] + term
    z = (acc[0] + acc[1]) + (acc[2] + acc[3]) + dwb_ref[...]     # (I, T)

    # --- SiLU ---
    y = z * _sigmoid_via_tanh(z)

    # --- pointwise Conv1d(inner -> dim, k=1): (D, I) @ (I, T) ---
    o = jnp.dot(w2_ref[...], y, preferred_element_type=jnp.float32) + b2_ref[...]

    # Lane-dense (D, TOTAL) output store (full 128-lane unmasked stores).
    out_ref[...] = o.astype(out_ref.dtype)


def conformer_conv_module(x, kparams):
    b, n, d = x.shape
    assert (b, n, d) == (BATCH, SEQ, DIM)
    # No input transpose HLO: just a free contiguous reshape to (B*N, D).
    xt = x.reshape(b * n, d)

    def full(shape):
        return pl.BlockSpec(shape, lambda i: (0,) * len(shape))

    out_ct = pl.pallas_call(
        conformer_conv_kernel,
        out_shape=jax.ShapeDtypeStruct((d, b * n), x.dtype),
        grid=(1,),
        in_specs=[
            full((b * n, d)),                                    # x (B*N, D)
            full((2 * INNER, DIM)), full((2 * INNER, 1)),        # pw conv1 W'/b' (LN folded)
            full((KSIZE, INNER, TOTAL)),                         # masked per-tap dw weights
            full((INNER, 1)),                                    # dw bias (BN folded)
            full((DIM, INNER)), full((DIM, 1)),                  # pw conv2 W / b
        ],
        out_specs=full((d, b * n)),
        compiler_params=pltpu.CompilerParams(
            dimension_semantics=("arbitrary",)),
    )(xt, *kparams)

    # Single tiny output transpose back to (B, N, D).
    return jnp.transpose(out_ct).reshape(b, n, d)


def make_params():
    """Deterministic synthetic parameters matching the PyTorch module's shapes.

    Returns (kernel_params, pytorch_layout_params)."""
    keys = jax.random.split(jax.random.PRNGKey(42), 8)
    # LayerNorm(dim): default init gamma=1, beta=0
    ln_g = jnp.ones((DIM,), jnp.float32)
    ln_b = jnp.zeros((DIM,), jnp.float32)
    # Conv1d(dim, 2*inner, 1): weight (2*inner, dim, 1), bias (2*inner,)
    w1_pt = 0.1 * jax.random.normal(keys[0], (2 * INNER, DIM, 1), jnp.float32)
    b1 = 0.1 * jax.random.normal(keys[1], (2 * INNER,), jnp.float32)
    # depthwise Conv1d(inner, inner, 31, groups=inner): weight (inner, 1, 31)
    dw_pt = 0.1 * jax.random.normal(keys[2], (INNER, 1, KSIZE), jnp.float32)
    dwb = 0.1 * jax.random.normal(keys[3], (INNER,), jnp.float32)
    # BatchNorm1d(inner): gamma, beta, running_mean=0, running_var=1 (eval mode)
    bn_g = 1.0 + 0.1 * jax.random.normal(keys[4], (INNER,), jnp.float32)
    bn_b = 0.1 * jax.random.normal(keys[5], (INNER,), jnp.float32)
    bn_mean = jnp.zeros((INNER,), jnp.float32)
    bn_var = jnp.ones((INNER,), jnp.float32)
    # Conv1d(inner, dim, 1): weight (dim, inner, 1), bias (dim,)
    w2_pt = 0.1 * jax.random.normal(keys[6], (DIM, INNER, 1), jnp.float32)
    b2 = 0.1 * jax.random.normal(keys[7], (DIM,), jnp.float32)

    pt_params = (ln_g, ln_b, w1_pt, b1, dw_pt, dwb,
                 bn_g, bn_b, bn_mean, bn_var, w2_pt, b2)

    # --- fold LayerNorm affine into pointwise conv1 (exact):
    #     W1' = W1 * gamma[None, :],  b1' = b1 + W1 @ beta ---
    w1 = w1_pt[:, :, 0]                                          # (2I, D)
    w1f = w1 * ln_g[None, :]
    b1f = b1 + w1 @ ln_b

    # --- fold eval-mode BatchNorm into the depthwise conv (exact affine) ---
    bn_scale = bn_g / jnp.sqrt(bn_var + BN_EPS)
    bn_shift = bn_b - bn_mean * bn_scale
    dw_f = dw_pt[:, 0, :] * bn_scale[:, None]                    # (I, K)
    dwb_f = dwb * bn_scale + bn_shift                            # (I,)

    # --- precompute per-tap depthwise weights as masked, lane-broadcast slabs:
    #     dw_taps[k, c, t] = dw_f[c, k] if 0 <= (t % SEQ) + (k - PAD) < SEQ else 0
    #     (emulates per-batch zero padding; blocks cross-batch / wraparound). ---
    n_pos = jnp.arange(TOTAL) % SEQ                              # batch-local time
    offs = jnp.arange(KSIZE) - PAD
    tgt = n_pos[None, :] + offs[:, None]                         # (K, T)
    valid = ((tgt >= 0) & (tgt < SEQ)).astype(jnp.float32)       # (K, T)
    dw_taps = dw_f.T[:, :, None] * valid[:, None, :]             # (K, I, T)

    kparams = (
        w1f, b1f.reshape(2 * INNER, 1),                          # (2I, D), (2I, 1)
        dw_taps, dwb_f.reshape(INNER, 1),                        # (K, I, T), (I, 1)
        w2_pt[:, :, 0], b2.reshape(DIM, 1),                      # (D, I), (D, 1)
    )
    return kparams, pt_params


def reference_jax(x, pt_params):
    """Independent pure-JAX reference using lax.conv_general_dilated
    (matches PyTorch Conv1d / GLU / BN-eval / SiLU semantics)."""
    (ln_g, ln_b, w1_pt, b1, dw_pt, dwb, bn_g, bn_b, bn_mean, bn_var,
     w2_pt, b2) = pt_params
    xf = x.astype(jnp.float32)
    mean = jnp.mean(xf, axis=-1, keepdims=True)
    var = jnp.mean((xf - mean) ** 2, axis=-1, keepdims=True)
    h = (xf - mean) / jnp.sqrt(var + LN_EPS) * ln_g + ln_b       # (B, N, D)
    hc = jnp.transpose(h, (0, 2, 1))                             # (B, D, N)
    dn = ("NCH", "OIH", "NCH")
    p = lax.conv_general_dilated(hc, w1_pt, (1,), "VALID",
                                 dimension_numbers=dn) + b1[None, :, None]
    u = p[:, :INNER, :] * jax.nn.sigmoid(p[:, INNER:, :])        # GLU(dim=1)
    v = lax.conv_general_dilated(u, dw_pt, (1,), [(PAD, PAD)],
                                 dimension_numbers=dn,
                                 feature_group_count=INNER) + dwb[None, :, None]
    y = ((v - bn_mean[None, :, None])
         * jax.lax.rsqrt(bn_var + BN_EPS)[None, :, None]
         * bn_g[None, :, None] + bn_b[None, :, None])
    y = y * jax.nn.sigmoid(y)                                    # SiLU
    o = lax.conv_general_dilated(y, w2_pt, (1,), "VALID",
                                 dimension_numbers=dn) + b2[None, :, None]
    return jnp.transpose(o, (0, 2, 1)).astype(x.dtype)


if __name__ == "__main__":
    key = jax.random.PRNGKey(0)
    x = jax.random.normal(key, (BATCH, SEQ, DIM), jnp.float32)
    kparams, pt_params = make_params()

    out = conformer_conv_module(x, kparams)
    out = jax.block_until_ready(out)

    ref = reference_jax(x, pt_params)
    assert out.shape == (BATCH, SEQ, DIM)
    assert jnp.allclose(out, ref, atol=1e-4, rtol=1e-4), "mismatch vs JAX reference"
    print("KERNEL_OK")
</pallas_src>

<mosaic_0001>
module attributes {stable_mosaic.version = 11 : i64} {
  func.func @conformer_conv_kernel(%arg0: i32, %arg1: memref<128x16xf32, #tpu.memory_space<vmem>>, %arg2: memref<64x16xf32, #tpu.memory_space<vmem>>, %arg3: memref<64x1xf32, #tpu.memory_space<vmem>>, %arg4: memref<31x32x128xf32, #tpu.memory_space<vmem>>, %arg5: memref<32x1xf32, #tpu.memory_space<vmem>>, %arg6: memref<16x32xf32, #tpu.memory_space<vmem>>, %arg7: memref<16x1xf32, #tpu.memory_space<vmem>>, %arg8: memref<16x128xf32, #tpu.memory_space<vmem>>) attributes {dimension_semantics = [#tpu.dimension_semantics<arbitrary>], iteration_bounds = array<i64: 1>, scalar_prefetch = 0 : i64, scratch_operands = 0 : i64, tpu.core_type = #tpu.core_type<tc>, window_params = [{pipeline_mode = #tpu.pipeline_mode<synchronous>, transform_indices = @transform_0, window_bounds = array<i64: 128, 16>}, {pipeline_mode = #tpu.pipeline_mode<synchronous>, transform_indices = @transform_1, window_bounds = array<i64: 64, 16>}, {pipeline_mode = #tpu.pipeline_mode<synchronous>, transform_indices = @transform_2, window_bounds = array<i64: 64, 1>}, {pipeline_mode = #tpu.pipeline_mode<synchronous>, transform_indices = @transform_3, window_bounds = array<i64: 31, 32, 128>}, {pipeline_mode = #tpu.pipeline_mode<synchronous>, transform_indices = @transform_4, window_bounds = array<i64: 32, 1>}, {pipeline_mode = #tpu.pipeline_mode<synchronous>, transform_indices = @transform_5, window_bounds = array<i64: 16, 32>}, {pipeline_mode = #tpu.pipeline_mode<synchronous>, transform_indices = @transform_6, window_bounds = array<i64: 16, 1>}, {pipeline_mode = #tpu.pipeline_mode<synchronous>, transform_indices = @transform_7, window_bounds = array<i64: 16, 128>}]} {
    %c0 = arith.constant 0 : index
    %c0_0 = arith.constant 0 : index
    %0 = vector.load %arg1[%c0, %c0_0] : memref<128x16xf32, #tpu.memory_space<vmem>>, vector<128x16xf32>
    %cst = arith.constant dense<0.000000e+00> : vector<128xf32>
    %1 = vector.multi_reduction <add>, %0, %cst [1] : vector<128x16xf32> to vector<128xf32>
    %2 = vector.shape_cast %1 : vector<128xf32> to vector<128x1xf32>
    %cst_1 = arith.constant 1.600000e+01 : f32
    %3 = vector.broadcast %cst_1 : f32 to vector<128x1xf32>
    %4 = arith.divf %2, %3 : vector<128x1xf32>
    %5 = vector.broadcast %4 : vector<128x1xf32> to vector<128x16xf32>
    %6 = arith.subf %0, %5 : vector<128x16xf32>
    %7 = arith.mulf %6, %6 : vector<128x16xf32>
    %cst_2 = arith.constant dense<0.000000e+00> : vector<128xf32>
    %8 = vector.multi_reduction <add>, %7, %cst_2 [1] : vector<128x16xf32> to vector<128xf32>
    %9 = vector.shape_cast %8 : vector<128xf32> to vector<128x1xf32>
    %cst_3 = arith.constant 1.600000e+01 : f32
    %10 = vector.broadcast %cst_3 : f32 to vector<128x1xf32>
    %11 = arith.divf %9, %10 : vector<128x1xf32>
    %12 = vector.broadcast %4 : vector<128x1xf32> to vector<128x16xf32>
    %13 = arith.subf %0, %12 : vector<128x16xf32>
    %cst_4 = arith.constant 9.99999974E-6 : f32
    %14 = vector.broadcast %cst_4 : f32 to vector<128x1xf32>
    %15 = arith.addf %11, %14 : vector<128x1xf32>
    %16 = math.rsqrt %15 : vector<128x1xf32>
    %17 = vector.broadcast %16 : vector<128x1xf32> to vector<128x16xf32>
    %18 = arith.mulf %13, %17 : vector<128x16xf32>
    %c0_5 = arith.constant 0 : index
    %c0_6 = arith.constant 0 : index
    %19 = vector.load %arg2[%c0_5, %c0_6] : memref<64x16xf32, #tpu.memory_space<vmem>>, vector<64x16xf32>
    %cst_7 = arith.constant dense<0.000000e+00> : vector<64x128xf32>
    %20 = tpu.matmul %19, %18, %cst_7 {dimension_numbers = #tpu.dot_dimension_numbers<[1], [1], [0], [0], [0, 0, 1, 0], [], []>} : vector<64x16xf32>, vector<128x16xf32>, vector<64x128xf32> -> vector<64x128xf32>
    %c0_8 = arith.constant 0 : index
    %c0_9 = arith.constant 0 : index
    %21 = vector.load %arg3[%c0_8, %c0_9] : memref<64x1xf32, #tpu.memory_space<vmem>>, vector<64x1xf32>
    %22 = vector.broadcast %21 : vector<64x1xf32> to vector<64x128xf32>
    %23 = arith.addf %20, %22 : vector<64x128xf32>
    %24 = vector.extract_strided_slice %23 {offsets = [0, 0], sizes = [32, 128], strides = [1, 1]} : vector<64x128xf32> to vector<32x128xf32>
    %25 = vector.extract_strided_slice %23 {offsets = [32, 0], sizes = [32, 128], strides = [1, 1]} : vector<64x128xf32> to vector<32x128xf32>
    %cst_10 = arith.constant 5.000000e-01 : f32
    %26 = vector.broadcast %cst_10 : f32 to vector<32x128xf32>
    %27 = arith.mulf %26, %25 : vector<32x128xf32>
    %28 = math.tanh %27 : vector<32x128xf32>
    %cst_11 = arith.constant 1.000000e+00 : f32
    %29 = vector.broadcast %cst_11 : f32 to vector<32x128xf32>
    %30 = arith.addf %29, %28 : vector<32x128xf32>
    %cst_12 = arith.constant 5.000000e-01 : f32
    %31 = vector.broadcast %cst_12 : f32 to vector<32x128xf32>
    %32 = arith.mulf %31, %30 : vector<32x128xf32>
    %33 = arith.mulf %24, %32 : vector<32x128xf32>
    %c15_i32 = arith.constant 15 : i32
    %34 = tpu.dynamic_rotate %33 by %c15_i32 dim 1 : vector<32x128xf32>, i32 -> vector<32x128xf32>
    %c0_13 = arith.constant 0 : index
    %c0_14 = arith.constant 0 : index
    %c0_15 = arith.constant 0 : index
    %35 = vector.load %arg4[%c0_13, %c0_14, %c0_15] : memref<31x32x128xf32, #tpu.memory_space<vmem>>, vector<1x32x128xf32>
    %36 = vector.shape_cast %35 : vector<1x32x128xf32> to vector<32x128xf32>
    %37 = arith.mulf %34, %36 : vector<32x128xf32>
    %c14_i32 = arith.constant 14 : i32
    %38 = tpu.dynamic_rotate %33 by %c14_i32 dim 1 : vector<32x128xf32>, i32 -> vector<32x128xf32>
    %c1 = arith.constant 1 : index
    %c0_16 = arith.constant 0 : index
    %c0_17 = arith.constant 0 : index
    %39 = vector.load %arg4[%c1, %c0_16, %c0_17] : memref<31x32x128xf32, #tpu.memory_space<vmem>>, vector<1x32x128xf32>
    %40 = vector.shape_cast %39 : vector<1x32x128xf32> to vector<32x128xf32>
    %41 = arith.mulf %38, %40 : vector<32x128xf32>
    %c13_i32 = arith.constant 13 : i32
    %42 = tpu.dynamic_rotate %33 by %c13_i32 dim 1 : vector<32x128xf32>, i32 -> vector<32x128xf32>
    %c2 = arith.constant 2 : index
    %c0_18 = arith.constant 0 : index
    %c0_19 = arith.constant 0 : index
    %43 = vector.load %arg4[%c2, %c0_18, %c0_19] : memref<31x32x128xf32, #tpu.memory_space<vmem>>, vector<1x32x128xf32>
    %44 = vector.shape_cast %43 : vector<1x32x128xf32> to vector<32x128xf32>
    %45 = arith.mulf %42, %44 : vector<32x128xf32>
    %c12_i32 = arith.constant 12 : i32
    %46 = tpu.dynamic_rotate %33 by %c12_i32 dim 1 : vector<32x128xf32>, i32 -> vector<32x128xf32>
    %c3 = arith.constant 3 : index
    %c0_20 = arith.constant 0 : index
    %c0_21 = arith.constant 0 : index
    %47 = vector.load %arg4[%c3, %c0_20, %c0_21] : memref<31x32x128xf32, #tpu.memory_space<vmem>>, vector<1x32x128xf32>
    %48 = vector.shape_cast %47 : vector<1x32x128xf32> to vector<32x128xf32>
    %49 = arith.mulf %46, %48 : vector<32x128xf32>
    %c11_i32 = arith.constant 11 : i32
    %50 = tpu.dynamic_rotate %33 by %c11_i32 dim 1 : vector<32x128xf32>, i32 -> vector<32x128xf32>
    %c4 = arith.constant 4 : index
    %c0_22 = arith.constant 0 : index
    %c0_23 = arith.constant 0 : index
    %51 = vector.load %arg4[%c4, %c0_22, %c0_23] : memref<31x32x128xf32, #tpu.memory_space<vmem>>, vector<1x32x128xf32>
    %52 = vector.shape_cast %51 : vector<1x32x128xf32> to vector<32x128xf32>
    %53 = arith.mulf %50, %52 : vector<32x128xf32>
    %54 = arith.addf %37, %53 : vector<32x128xf32>
    %c10_i32 = arith.constant 10 : i32
    %55 = tpu.dynamic_rotate %33 by %c10_i32 dim 1 : vector<32x128xf32>, i32 -> vector<32x128xf32>
    %c5 = arith.constant 5 : index
    %c0_24 = arith.constant 0 : index
    %c0_25 = arith.constant 0 : index
    %56 = vector.load %arg4[%c5, %c0_24, %c0_25] : memref<31x32x128xf32, #tpu.memory_space<vmem>>, vector<1x32x128xf32>
    %57 = vector.shape_cast %56 : vector<1x32x128xf32> to vector<32x128xf32>
    %58 = arith.mulf %55, %57 : vector<32x128xf32>
    %59 = arith.addf %41, %58 : vector<32x128xf32>
    %c9_i32 = arith.constant 9 : i32
    %60 = tpu.dynamic_rotate %33 by %c9_i32 dim 1 : vector<32x128xf32>, i32 -> vector<32x128xf32>
    %c6 = arith.constant 6 : index
    %c0_26 = arith.constant 0 : index
    %c0_27 = arith.constant 0 : index
    %61 = vector.load %arg4[%c6, %c0_26, %c0_27] : memref<31x32x128xf32, #tpu.memory_space<vmem>>, vector<1x32x128xf32>
    %62 = vector.shape_cast %61 : vector<1x32x128xf32> to vector<32x128xf32>
    %63 = arith.mulf %60, %62 : vector<32x128xf32>
    %64 = arith.addf %45, %63 : vector<32x128xf32>
    %c8_i32 = arith.constant 8 : i32
    %65 = tpu.dynamic_rotate %33 by %c8_i32 dim 1 : vector<32x128xf32>, i32 -> vector<32x128xf32>
    %c7 = arith.constant 7 : index
    %c0_28 = arith.constant 0 : index
    %c0_29 = arith.constant 0 : index
    %66 = vector.load %arg4[%c7, %c0_28, %c0_29] : memref<31x32x128xf32, #tpu.memory_space<vmem>>, vector<1x32x128xf32>
    %67 = vector.shape_cast %66 : vector<1x32x128xf32> to vector<32x128xf32>
    %68 = arith.mulf %65, %67 : vector<32x128xf32>
    %69 = arith.addf %49, %68 : vector<32x128xf32>
    %c7_i32 = arith.constant 7 : i32
    %70 = tpu.dynamic_rotate %33 by %c7_i32 dim 1 : vector<32x128xf32>, i32 -> vector<32x128xf32>
    %c8 = arith.constant 8 : index
    %c0_30 = arith.constant 0 : index
    %c0_31 = arith.constant 0 : index
    %71 = vector.load %arg4[%c8, %c0_30, %c0_31] : memref<31x32x128xf32, #tpu.memory_space<vmem>>, vector<1x32x128xf32>
    %72 = vector.shape_cast %71 : vector<1x32x128xf32> to vector<32x128xf32>
    %73 = arith.mulf %70, %72 : vector<32x128xf32>
    %74 = arith.addf %54, %73 : vector<32x128xf32>
    %c6_i32 = arith.constant 6 : i32
    %75 = tpu.dynamic_rotate %33 by %c6_i32 dim 1 : vector<32x128xf32>, i32 -> vector<32x128xf32>
    %c9 = arith.constant 9 : index
    %c0_32 = arith.constant 0 : index
    %c0_33 = arith.constant 0 : index
    %76 = vector.load %arg4[%c9, %c0_32, %c0_33] : memref<31x32x128xf32, #tpu.memory_space<vmem>>, vector<1x32x128xf32>
    %77 = vector.shape_cast %76 : vector<1x32x128xf32> to vector<32x128xf32>
    %78 = arith.mulf %75, %77 : vector<32x128xf32>
    %79 = arith.addf %59, %78 : vector<32x128xf32>
    %c5_i32 = arith.constant 5 : i32
    %80 = tpu.dynamic_rotate %33 by %c5_i32 dim 1 : vector<32x128xf32>, i32 -> vector<32x128xf32>
    %c10 = arith.constant 10 : index
    %c0_34 = arith.constant 0 : index
    %c0_35 = arith.constant 0 : index
    %81 = vector.load %arg4[%c10, %c0_34, %c0_35] : memref<31x32x128xf32, #tpu.memory_space<vmem>>, vector<1x32x128xf32>
    %82 = vector.shape_cast %81 : vector<1x32x128xf32> to vector<32x128xf32>
    %83 = arith.mulf %80, %82 : vector<32x128xf32>
    %84 = arith.addf %64, %83 : vector<32x128xf32>
    %c4_i32 = arith.constant 4 : i32
    %85 = tpu.dynamic_rotate %33 by %c4_i32 dim 1 : vector<32x128xf32>, i32 -> vector<32x128xf32>
    %c11 = arith.constant 11 : index
    %c0_36 = arith.constant 0 : index
    %c0_37 = arith.constant 0 : index
    %86 = vector.load %arg4[%c11, %c0_36, %c0_37] : memref<31x32x128xf32, #tpu.memory_space<vmem>>, vector<1x32x128xf32>
    %87 = vector.shape_cast %86 : vector<1x32x128xf32> to vector<32x128xf32>
    %88 = arith.mulf %85, %87 : vector<32x128xf32>
    %89 = arith.addf %69, %88 : vector<32x128xf32>
    %c3_i32 = arith.constant 3 : i32
    %90 = tpu.dynamic_rotate %33 by %c3_i32 dim 1 : vector<32x128xf32>, i32 -> vector<32x128xf32>
    %c12 = arith.constant 12 : index
    %c0_38 = arith.constant 0 : index
    %c0_39 = arith.constant 0 : index
    %91 = vector.load %arg4[%c12, %c0_38, %c0_39] : memref<31x32x128xf32, #tpu.memory_space<vmem>>, vector<1x32x128xf32>
    %92 = vector.shape_cast %91 : vector<1x32x128xf32> to vector<32x128xf32>
    %93 = arith.mulf %90, %92 : vector<32x128xf32>
    %94 = arith.addf %74, %93 : vector<32x128xf32>
    %c2_i32 = arith.constant 2 : i32
    %95 = tpu.dynamic_rotate %33 by %c2_i32 dim 1 : vector<32x128xf32>, i32 -> vector<32x128xf32>
    %c13 = arith.constant 13 : index
    %c0_40 = arith.constant 0 : index
    %c0_41 = arith.constant 0 : index
    %96 = vector.load %arg4[%c13, %c0_40, %c0_41] : memref<31x32x128xf32, #tpu.memory_space<vmem>>, vector<1x32x128xf32>
    %97 = vector.shape_cast %96 : vector<1x32x128xf32> to vector<32x128xf32>
    %98 = arith.mulf %95, %97 : vector<32x128xf32>
    %99 = arith.addf %79, %98 : vector<32x128xf32>
    %c1_i32 = arith.constant 1 : i32
    %100 = tpu.dynamic_rotate %33 by %c1_i32 dim 1 : vector<32x128xf32>, i32 -> vector<32x128xf32>
    %c14 = arith.constant 14 : index
    %c0_42 = arith.constant 0 : index
    %c0_43 = arith.constant 0 : index
    %101 = vector.load %arg4[%c14, %c0_42, %c0_43] : memref<31x32x128xf32, #tpu.memory_space<vmem>>, vector<1x32x128xf32>
    %102 = vector.shape_cast %101 : vector<1x32x128xf32> to vector<32x128xf32>
    %103 = arith.mulf %100, %102 : vector<32x128xf32>
    %104 = arith.addf %84, %103 : vector<32x128xf32>
    %c15 = arith.constant 15 : index
    %c0_44 = arith.constant 0 : index
    %c0_45 = arith.constant 0 : index
    %105 = vector.load %arg4[%c15, %c0_44, %c0_45] : memref<31x32x128xf32, #tpu.memory_space<vmem>>, vector<1x32x128xf32>
    %106 = vector.shape_cast %105 : vector<1x32x128xf32> to vector<32x128xf32>
    %107 = arith.mulf %33, %106 : vector<32x128xf32>
    %108 = arith.addf %89, %107 : vector<32x128xf32>
    %c127_i32 = arith.constant 127 : i32
    %109 = tpu.dynamic_rotate %33 by %c127_i32 dim 1 : vector<32x128xf32>, i32 -> vector<32x128xf32>
    %c16 = arith.constant 16 : index
    %c0_46 = arith.constant 0 : index
    %c0_47 = arith.constant 0 : index
    %110 = vector.load %arg4[%c16, %c0_46, %c0_47] : memref<31x32x128xf32, #tpu.memory_space<vmem>>, vector<1x32x128xf32>
    %111 = vector.shape_cast %110 : vector<1x32x128xf32> to vector<32x128xf32>
    %112 = arith.mulf %109, %111 : vector<32x128xf32>
    %113 = arith.addf %94, %112 : vector<32x128xf32>
    %c126_i32 = arith.constant 126 : i32
    %114 = tpu.dynamic_rotate %33 by %c126_i32 dim 1 : vector<32x128xf32>, i32 -> vector<32x128xf32>
    %c17 = arith.constant 17 : index
    %c0_48 = arith.constant 0 : index
    %c0_49 = arith.constant 0 : index
    %115 = vector.load %arg4[%c17, %c0_48, %c0_49] : memref<31x32x128xf32, #tpu.memory_space<vmem>>, vector<1x32x128xf32>
    %116 = vector.shape_cast %115 : vector<1x32x128xf32> to vector<32x128xf32>
    %117 = arith.mulf %114, %116 : vector<32x128xf32>
    %118 = arith.addf %99, %117 : vector<32x128xf32>
    %c125_i32 = arith.constant 125 : i32
    %119 = tpu.dynamic_rotate %33 by %c125_i32 dim 1 : vector<32x128xf32>, i32 -> vector<32x128xf32>
    %c18 = arith.constant 18 : index
    %c0_50 = arith.constant 0 : index
    %c0_51 = arith.constant 0 : index
    %120 = vector.load %arg4[%c18, %c0_50, %c0_51] : memref<31x32x128xf32, #tpu.memory_space<vmem>>, vector<1x32x128xf32>
    %121 = vector.shape_cast %120 : vector<1x32x128xf32> to vector<32x128xf32>
    %122 = arith.mulf %119, %121 : vector<32x128xf32>
    %123 = arith.addf %104, %122 : vector<32x128xf32>
    %c124_i32 = arith.constant 124 : i32
    %124 = tpu.dynamic_rotate %33 by %c124_i32 dim 1 : vector<32x128xf32>, i32 -> vector<32x128xf32>
    %c19 = arith.constant 19 : index
    %c0_52 = arith.constant 0 : index
    %c0_53 = arith.constant 0 : index
    %125 = vector.load %arg4[%c19, %c0_52, %c0_53] : memref<31x32x128xf32, #tpu.memory_space<vmem>>, vector<1x32x128xf32>
    %126 = vector.shape_cast %125 : vector<1x32x128xf32> to vector<32x128xf32>
    %127 = arith.mulf %124, %126 : vector<32x128xf32>
    %128 = arith.addf %108, %127 : vector<32x128xf32>
    %c123_i32 = arith.constant 123 : i32
    %129 = tpu.dynamic_rotate %33 by %c123_i32 dim 1 : vector<32x128xf32>, i32 -> vector<32x128xf32>
    %c20 = arith.constant 20 : index
    %c0_54 = arith.constant 0 : index
    %c0_55 = arith.constant 0 : index
    %130 = vector.load %arg4[%c20, %c0_54, %c0_55] : memref<31x32x128xf32, #tpu.memory_space<vmem>>, vector<1x32x128xf32>
    %131 = vector.shape_cast %130 : vector<1x32x128xf32> to vector<32x128xf32>
    %132 = arith.mulf %129, %131 : vector<32x128xf32>
    %133 = arith.addf %113, %132 : vector<32x128xf32>
    %c122_i32 = arith.constant 122 : i32
    %134 = tpu.dynamic_rotate %33 by %c122_i32 dim 1 : vector<32x128xf32>, i32 -> vector<32x128xf32>
    %c21 = arith.constant 21 : index
    %c0_56 = arith.constant 0 : index
    %c0_57 = arith.constant 0 : index
    %135 = vector.load %arg4[%c21, %c0_56, %c0_57] : memref<31x32x128xf32, #tpu.memory_space<vmem>>, vector<1x32x128xf32>
    %136 = vector.shape_cast %135 : vector<1x32x128xf32> to vector<32x128xf32>
    %137 = arith.mulf %134, %136 : vector<32x128xf32>
    %138 = arith.addf %118, %137 : vector<32x128xf32>
    %c121_i32 = arith.constant 121 : i32
    %139 = tpu.dynamic_rotate %33 by %c121_i32 dim 1 : vector<32x128xf32>, i32 -> vector<32x128xf32>
    %c22 = arith.constant 22 : index
    %c0_58 = arith.constant 0 : index
    %c0_59 = arith.constant 0 : index
    %140 = vector.load %arg4[%c22, %c0_58, %c0_59] : memref<31x32x128xf32, #tpu.memory_space<vmem>>, vector<1x32x128xf32>
    %141 = vector.shape_cast %140 : vector<1x32x128xf32> to vector<32x128xf32>
    %142 = arith.mulf %139, %141 : vector<32x128xf32>
    %143 = arith.addf %123, %142 : vector<32x128xf32>
    %c120_i32 = arith.constant 120 : i32
    %144 = tpu.dynamic_rotate %33 by %c120_i32 dim 1 : vector<32x128xf32>, i32 -> vector<32x128xf32>
    %c23 = arith.constant 23 : index
    %c0_60 = arith.constant 0 : index
    %c0_61 = arith.constant 0 : index
    %145 = vector.load %arg4[%c23, %c0_60, %c0_61] : memref<31x32x128xf32, #tpu.memory_space<vmem>>, vector<1x32x128xf32>
    %146 = vector.shape_cast %145 : vector<1x32x128xf32> to vector<32x128xf32>
    %147 = arith.mulf %144, %146 : vector<32x128xf32>
    %148 = arith.addf %128, %147 : vector<32x128xf32>
    %c119_i32 = arith.constant 119 : i32
    %149 = tpu.dynamic_rotate %33 by %c119_i32 dim 1 : vector<32x128xf32>, i32 -> vector<32x128xf32>
    %c24 = arith.constant 24 : index
    %c0_62 = arith.constant 0 : index
    %c0_63 = arith.constant 0 : index
    %150 = vector.load %arg4[%c24, %c0_62, %c0_63] : memref<31x32x128xf32, #tpu.memory_space<vmem>>, vector<1x32x128xf32>
    %151 = vector.shape_cast %150 : vector<1x32x128xf32> to vector<32x128xf32>
    %152 = arith.mulf %149, %151 : vector<32x128xf32>
    %153 = arith.addf %133, %152 : vector<32x128xf32>
    %c118_i32 = arith.constant 118 : i32
    %154 = tpu.dynamic_rotate %33 by %c118_i32 dim 1 : vector<32x128xf32>, i32 -> vector<32x128xf32>
    %c25 = arith.constant 25 : index
    %c0_64 = arith.constant 0 : index
    %c0_65 = arith.constant 0 : index
    %155 = vector.load %arg4[%c25, %c0_64, %c0_65] : memref<31x32x128xf32, #tpu.memory_space<vmem>>, vector<1x32x128xf32>
    %156 = vector.shape_cast %155 : vector<1x32x128xf32> to vector<32x128xf32>
    %157 = arith.mulf %154, %156 : vector<32x128xf32>
    %158 = arith.addf %138, %157 : vector<32x128xf32>
    %c117_i32 = arith.constant 117 : i32
    %159 = tpu.dynamic_rotate %33 by %c117_i32 dim 1 : vector<32x128xf32>, i32 -> vector<32x128xf32>
    %c26 = arith.constant 26 : index
    %c0_66 = arith.constant 0 : index
    %c0_67 = arith.constant 0 : index
    %160 = vector.load %arg4[%c26, %c0_66, %c0_67] : memref<31x32x128xf32, #tpu.memory_space<vmem>>, vector<1x32x128xf32>
    %161 = vector.shape_cast %160 : vector<1x32x128xf32> to vector<32x128xf32>
    %162 = arith.mulf %159, %161 : vector<32x128xf32>
    %163 = arith.addf %143, %162 : vector<32x128xf32>
    %c116_i32 = arith.constant 116 : i32
    %164 = tpu.dynamic_rotate %33 by %c116_i32 dim 1 : vector<32x128xf32>, i32 -> vector<32x128xf32>
    %c27 = arith.constant 27 : index
    %c0_68 = arith.constant 0 : index
    %c0_69 = arith.constant 0 : index
    %165 = vector.load %arg4[%c27, %c0_68, %c0_69] : memref<31x32x128xf32, #tpu.memory_space<vmem>>, vector<1x32x128xf32>
    %166 = vector.shape_cast %165 : vector<1x32x128xf32> to vector<32x128xf32>
    %167 = arith.mulf %164, %166 : vector<32x128xf32>
    %168 = arith.addf %148, %167 : vector<32x128xf32>
    %c115_i32 = arith.constant 115 : i32
    %169 = tpu.dynamic_rotate %33 by %c115_i32 dim 1 : vector<32x128xf32>, i32 -> vector<32x128xf32>
    %c28 = arith.constant 28 : index
    %c0_70 = arith.constant 0 : index
    %c0_71 = arith.constant 0 : index
    %170 = vector.load %arg4[%c28, %c0_70, %c0_71] : memref<31x32x128xf32, #tpu.memory_space<vmem>>, vector<1x32x128xf32>
    %171 = vector.shape_cast %170 : vector<1x32x128xf32> to vector<32x128xf32>
    %172 = arith.mulf %169, %171 : vector<32x128xf32>
    %173 = arith.addf %153, %172 : vector<32x128xf32>
    %c114_i32 = arith.constant 114 : i32
    %174 = tpu.dynamic_rotate %33 by %c114_i32 dim 1 : vector<32x128xf32>, i32 -> vector<32x128xf32>
    %c29 = arith.constant 29 : index
    %c0_72 = arith.constant 0 : index
    %c0_73 = arith.constant 0 : index
    %175 = vector.load %arg4[%c29, %c0_72, %c0_73] : memref<31x32x128xf32, #tpu.memory_space<vmem>>, vector<1x32x128xf32>
    %176 = vector.shape_cast %175 : vector<1x32x128xf32> to vector<32x128xf32>
    %177 = arith.mulf %174, %176 : vector<32x128xf32>
    %178 = arith.addf %158, %177 : vector<32x128xf32>
    %c113_i32 = arith.constant 113 : i32
    %179 = tpu.dynamic_rotate %33 by %c113_i32 dim 1 : vector<32x128xf32>, i32 -> vector<32x128xf32>
    %c30 = arith.constant 30 : index
    %c0_74 = arith.constant 0 : index
    %c0_75 = arith.constant 0 : index
    %180 = vector.load %arg4[%c30, %c0_74, %c0_75] : memref<31x32x128xf32, #tpu.memory_space<vmem>>, vector<1x32x128xf32>
    %181 = vector.shape_cast %180 : vector<1x32x128xf32> to vector<32x128xf32>
    %182 = arith.mulf %179, %181 : vector<32x128xf32>
    %183 = arith.addf %163, %182 : vector<32x128xf32>
    %184 = arith.addf %173, %178 : vector<32x128xf32>
    %185 = arith.addf %183, %168 : vector<32x128xf32>
    %186 = arith.addf %184, %185 : vector<32x128xf32>
    %c0_76 = arith.constant 0 : index
    %c0_77 = arith.constant 0 : index
    %187 = vector.load %arg5[%c0_76, %c0_77] : memref<32x1xf32, #tpu.memory_space<vmem>>, vector<32x1xf32>
    %188 = vector.broadcast %187 : vector<32x1xf32> to vector<32x128xf32>
    %189 = arith.addf %186, %188 : vector<32x128xf32>
    %cst_78 = arith.constant 5.000000e-01 : f32
    %190 = vector.broadcast %cst_78 : f32 to vector<32x128xf32>
    %191 = arith.mulf %190, %189 : vector<32x128xf32>
    %192 = math.tanh %191 : vector<32x128xf32>
    %cst_79 = arith.constant 1.000000e+00 : f32
    %193 = vector.broadcast %cst_79 : f32 to vector<32x128xf32>
    %194 = arith.addf %193, %192 : vector<32x128xf32>
    %cst_80 = arith.constant 5.000000e-01 : f32
    %195 = vector.broadcast %cst_80 : f32 to vector<32x128xf32>
    %196 = arith.mulf %195, %194 : vector<32x128xf32>
    %197 = arith.mulf %189, %196 : vector<32x128xf32>
    %c0_81 = arith.constant 0 : index
    %c0_82 = arith.constant 0 : index
    %198 = vector.load %arg6[%c0_81, %c0_82] : memref<16x32xf32, #tpu.memory_space<vmem>>, vector<16x32xf32>
    %cst_83 = arith.constant dense<0.000000e+00> : vector<16x128xf32>
    %199 = tpu.matmul %198, %197, %cst_83 {dimension_numbers = #tpu.dot_dimension_numbers<[1], [0], [0], [1], [0, 0, 1, 1], [], []>} : vector<16x32xf32>, vector<32x128xf32>, vector<16x128xf32> -> vector<16x128xf32>
    %c0_84 = arith.constant 0 : index
    %c0_85 = arith.constant 0 : index
    %200 = vector.load %arg7[%c0_84, %c0_85] : memref<16x1xf32, #tpu.memory_space<vmem>>, vector<16x1xf32>
    %201 = vector.broadcast %200 : vector<16x1xf32> to vector<16x128xf32>
    %202 = arith.addf %199, %201 : vector<16x128xf32>
    %c0_86 = arith.constant 0 : index
    %c0_87 = arith.constant 0 : index
    %203 = vector.load %arg8[%c0_86, %c0_87] : memref<16x128xf32, #tpu.memory_space<vmem>>, vector<16x128xf32>
    tpu.vector_store %arg8[%c0_86, %c0_87], %202 {strides = array<i32>} : memref<16x128xf32, #tpu.memory_space<vmem>>, vector<16x128xf32>,
    return
  }
  func.func @transform_0(%arg0: i32) -> (i32, i32) {
    %c0_i32 = arith.constant 0 : i32
    %c0_i32_0 = arith.constant 0 : i32
    %c0_i32_1 = arith.constant 0 : i32
    return %c0_i32, %c0_i32_0 : i32, i32
  }
  func.func @transform_1(%arg0: i32) -> (i32, i32) {
    %c0_i32 = arith.constant 0 : i32
    %c0_i32_0 = arith.constant 0 : i32
    %c0_i32_1 = arith.constant 0 : i32
    return %c0_i32, %c0_i32_0 : i32, i32
  }
  func.func @transform_2(%arg0: i32) -> (i32, i32) {
    %c0_i32 = arith.constant 0 : i32
    %c0_i32_0 = arith.constant 0 : i32
    %c0_i32_1 = arith.constant 0 : i32
    return %c0_i32, %c0_i32_0 : i32, i32
  }
  func.func @transform_3(%arg0: i32) -> (i32, i32, i32) {
    %c0_i32 = arith.constant 0 : i32
    %c0_i32_0 = arith.constant 0 : i32
    %c0_i32_1 = arith.constant 0 : i32
    %c0_i32_2 = arith.constant 0 : i32
    return %c0_i32, %c0_i32_0, %c0_i32_1 : i32, i32, i32
  }
  func.func @transform_4(%arg0: i32) -> (i32, i32) {
    %c0_i32 = arith.constant 0 : i32
    %c0_i32_0 = arith.constant 0 : i32
    %c0_i32_1 = arith.constant 0 : i32
    return %c0_i32, %c0_i32_0 : i32, i32
  }
  func.func @transform_5(%arg0: i32) -> (i32, i32) {
    %c0_i32 = arith.constant 0 : i32
    %c0_i32_0 = arith.constant 0 : i32
    %c0_i32_1 = arith.constant 0 : i32
    return %c0_i32, %c0_i32_0 : i32, i32
  }
  func.func @transform_6(%arg0: i32) -> (i32, i32) {
    %c0_i32 = arith.constant 0 : i32
    %c0_i32_0 = arith.constant 0 : i32
    %c0_i32_1 = arith.constant 0 : i32
    return %c0_i32, %c0_i32_0 : i32, i32
  }
  func.func @transform_7(%arg0: i32) -> (i32, i32) {
    %c0_i32 = arith.constant 0 : i32
    %c0_i32_0 = arith.constant 0 : i32
    %c0_i32_1 = arith.constant 0 : i32
    return %c0_i32, %c0_i32_0 : i32, i32
  }
}

</mosaic_0001>

<llo_original>
// kernel: tpu_custom_call.1
$region0: #{tpu_custom_call.1}
  #allocation0 [shape = 'u32[]', space=smem, size = 0x4, offset = 0x4, fixed_abs, tag = 'smem constant byte address 0x4 - core index']
  #allocation1 [shape = 'u32[144,128]{1,0:T(1,128)}', space=vmem, size = 0x12000, scoped, tag = 'internal scratch']
  %s0 = inlined_call_operand.vmem [shape: f32[128,16], index: 0, kind: input, shape index: {}]
  %s1 = inlined_call_operand.vmem [shape: f32[64,16], index: 1, kind: input, shape index: {}]
  %s2 = inlined_call_operand.vmem [shape: f32[64,1], index: 2, kind: input, shape index: {}]
  %s3 = inlined_call_operand.hbm [shape: f32[31,32,128], index: 3, kind: input, shape index: {}]
  %s4 = inlined_call_operand.vmem [shape: f32[32,1], index: 4, kind: input, shape index: {}]
  %s5 = inlined_call_operand.vmem [shape: f32[16,32], index: 5, kind: input, shape index: {}]
  %s6 = inlined_call_operand.vmem [shape: f32[16,1], index: 6, kind: input, shape index: {}]
  %s7 = inlined_call_operand.hbm [shape: f32[16,128], index: 7, kind: output, shape index: {}]
  %s8 = sld [smem:[#allocation0]]
  $region42: #{tpu_custom_call.1} parent=0
    _
  %s10 = ssub.s32 1, %s8
  %s11 = scalar_select 0, %s10, %s8
  $region1: #{tpu_custom_call.1} parent=0
    #allocation2 [shape = 'u8[507904]{0}', space=vmem, size = 0x7c000, scoped, tag = 'input window, operand 3, single buffered']
    #allocation3 [shape = 's32[1]{0}', space=sflag, size = 0x4, scoped, tag = 'scoped memory for tpu_custom_call.1']
    #allocation4 [shape = 's32[1]{0}', space=sflag, size = 0x4, scoped, tag = 'scoped memory for tpu_custom_call.1']
    #allocation5 [shape = 'u8[8192]{0}', space=vmem, size = 0x2000, scoped, tag = 'output window, operand 0, single buffered']
    %12 = vsyncpa [#allocation3], 0
    %13 = vsyncpa [#allocation4], 0
    // Predicated region
    $region2: #{tpu_custom_call.1} parent=1 // pred_check
      _
    $region3: #{tpu_custom_call.1} parent=1 // pred_check_branch
      %15 = sbr.rel (0) target = $region5
    $region4: #{tpu_custom_call.1} parent=1 // pred_region
      _
    $region5: #{tpu_custom_call.1} parent=1 // pred_fallthru
      _
    // Predicated region
    $region6: #{tpu_custom_call.1} parent=1 // pred_check
      _
    $region7: #{tpu_custom_call.1} parent=1 // pred_check_branch
      %17 = sbr.rel (0) target = $region9
    $region8: #{tpu_custom_call.1} parent=1 // pred_region
      _
    $region9: #{tpu_custom_call.1} parent=1 // pred_fallthru
      _
    // Predicated region
    $region10: #{tpu_custom_call.1} parent=1 // pred_check
      _
    $region11: #{tpu_custom_call.1} parent=1 // pred_check_branch
      %19 = sbr.rel (0) target = $region13
    $region12: #{tpu_custom_call.1} parent=1 // pred_region
      _
    $region13: #{tpu_custom_call.1} parent=1 // pred_fallthru
      _
    // Predicated region
    $region14: #{tpu_custom_call.1} parent=1 // pred_check
      _
    $region15: #{tpu_custom_call.1} parent=1 // pred_check_branch
      %21 = sbr.rel (0) target = $region17
    $region16: #{tpu_custom_call.1} parent=1 // pred_region
      %s23 = ssub.s32 15872, 15872
      %24 = vsyncadd [#allocation3], %s23
      %s25 = sshll.u32 [#allocation2], 4
      %s26 = int_to_ptr.vmem [resolvable:$true] %s25
      %31 = dma.hbm_to_vmem [thread:$0]  %s3, 15872, %s26, [#allocation3], 128, 128, 8
    $region17: #{tpu_custom_call.1} parent=1 // pred_fallthru
      _
    // Predicated region
    $region18: #{tpu_custom_call.1} parent=1 // pred_check
      _
    $region19: #{tpu_custom_call.1} parent=1 // pred_check_branch
      %33 = sbr.rel (0) target = $region21
    $region20: #{tpu_custom_call.1} parent=1 // pred_region
      _
    $region21: #{tpu_custom_call.1} parent=1 // pred_fallthru
      _
    // Predicated region
    $region22: #{tpu_custom_call.1} parent=1 // pred_check
      _
    $region23: #{tpu_custom_call.1} parent=1 // pred_check_branch
      %35 = sbr.rel (0) target = $region25
    $region24: #{tpu_custom_call.1} parent=1 // pred_region
      _
    $region25: #{tpu_custom_call.1} parent=1 // pred_fallthru
      _
    // Predicated region
    $region26: #{tpu_custom_call.1} parent=1 // pred_check
      _
    $region27: #{tpu_custom_call.1} parent=1 // pred_check_branch
      %37 = sbr.rel (0) target = $region29
    $region28: #{tpu_custom_call.1} parent=1 // pred_region
      _
    $region29: #{tpu_custom_call.1} parent=1 // pred_fallthru
      _
    // Predicated region
    $region30: #{tpu_custom_call.1} parent=1 // pred_check
      _
    $region31: #{tpu_custom_call.1} parent=1 // pred_check_branch
      %39 = sbr.rel (0) target = $region33
    $region32: #{tpu_custom_call.1} parent=1 // pred_region
      %40 = dma.done [#allocation3], 15872
    $region33: #{tpu_custom_call.1} parent=1 // pred_fallthru
      _
    %v41 = vld [vmem:[%s0] sm:$0xff]
    %v42 = vld [vmem:[%s0 + $0x8] sm:$0xff]
    %v43 = vld [vmem:[%s0 + $0x10] sm:$0xff]
    %v44 = vld [vmem:[%s0 + $0x18] sm:$0xff]
    %v45 = vld [vmem:[%s0 + $0x20] sm:$0xff]
    %v46 = vld [vmem:[%s0 + $0x28] sm:$0xff]
    %v47 = vld [vmem:[%s0 + $0x30] sm:$0xff]
    %v48 = vld [vmem:[%s0 + $0x38] sm:$0xff]
    %v49 = vld [vmem:[%s0 + $0x40] sm:$0xff]
    %v50 = vld [vmem:[%s0 + $0x48] sm:$0xff]
    %v51 = vld [vmem:[%s0 + $0x50] sm:$0xff]
    %v52 = vld [vmem:[%s0 + $0x58] sm:$0xff]
    %v53 = vld [vmem:[%s0 + $0x60] sm:$0xff]
    %v54 = vld [vmem:[%s0 + $0x68] sm:$0xff]
    %v55 = vld [vmem:[%s0 + $0x70] sm:$0xff]
    %v56 = vld [vmem:[%s0 + $0x78] sm:$0xff]
    %vm57 = vcmask 130048
    %v58 = vsel %vm57, %v41, 0.0
    %59 = vadd.xlane.f32.xlu0 %v58
    %v60 = vpop.xlane.xlu0 %59
    %v61 = vsel %vm57, %v42, 0.0
    %62 = vadd.xlane.f32.xlu0 %v61
    %v63 = vpop.xlane.xlu0 %62
    %v64 = vsel %vm57, %v43, 0.0
    %65 = vadd.xlane.f32.xlu0 %v64
    %v66 = vpop.xlane.xlu0 %65
    %v67 = vsel %vm57, %v44, 0.0
    %68 = vadd.xlane.f32.xlu0 %v67
    %v69 = vpop.xlane.xlu0 %68
    %v70 = vsel %vm57, %v45, 0.0
    %71 = vadd.xlane.f32.xlu0 %v70
    %v72 = vpop.xlane.xlu0 %71
    %v73 = vsel %vm57, %v46, 0.0
    %74 = vadd.xlane.f32.xlu0 %v73
    %v75 = vpop.xlane.xlu0 %74
    %v76 = vsel %vm57, %v47, 0.0
    %77 = vadd.xlane.f32.xlu0 %v76
    %v78 = vpop.xlane.xlu0 %77
    %v79 = vsel %vm57, %v48, 0.0
    %80 = vadd.xlane.f32.xlu0 %v79
    %v81 = vpop.xlane.xlu0 %80
    %v82 = vsel %vm57, %v49, 0.0
    %83 = vadd.xlane.f32.xlu0 %v82
    %v84 = vpop.xlane.xlu0 %83
    %v85 = vsel %vm57, %v50, 0.0
    %86 = vadd.xlane.f32.xlu0 %v85
    %v87 = vpop.xlane.xlu0 %86
    %v88 = vsel %vm57, %v51, 0.0
    %89 = vadd.xlane.f32.xlu0 %v88
    %v90 = vpop.xlane.xlu0 %89
    %v91 = vsel %vm57, %v52, 0.0
    %92 = vadd.xlane.f32.xlu0 %v91
    %v93 = vpop.xlane.xlu0 %92
    %v94 = vsel %vm57, %v53, 0.0
    %95 = vadd.xlane.f32.xlu0 %v94
    %v96 = vpop.xlane.xlu0 %95
    %v97 = vsel %vm57, %v54, 0.0
    %98 = vadd.xlane.f32.xlu0 %v97
    %v99 = vpop.xlane.xlu0 %98
    %v100 = vsel %vm57, %v55, 0.0
    %101 = vadd.xlane.f32.xlu0 %v100
    %v102 = vpop.xlane.xlu0 %101
    %v103 = vsel %vm57, %v56, 0.0
    %104 = vadd.xlane.f32.xlu0 %v103
    %v105 = vpop.xlane.xlu0 %104
    %v106 = vrcp.pop 16.0
    %v107 = vmul.f32 %v60, %v106
    %v108 = vmul.f32 %v63, %v106
    %v109 = vmul.f32 %v66, %v106
    %v110 = vmul.f32 %v69, %v106
    %v111 = vmul.f32 %v72, %v106
    %v112 = vmul.f32 %v75, %v106
    %v113 = vmul.f32 %v78, %v106
    %v114 = vmul.f32 %v81, %v106
    %v115 = vmul.f32 %v84, %v106
    %v116 = vmul.f32 %v87, %v106
    %v117 = vmul.f32 %v90, %v106
    %v118 = vmul.f32 %v93, %v106
    %v119 = vmul.f32 %v96, %v106
    %v120 = vmul.f32 %v99, %v106
    %v121 = vmul.f32 %v102, %v106
    %v122 = vmul.f32 %v105, %v106
    %v123 = vsub.f32 %v41, %v107
    %v124 = vsub.f32 %v42, %v108
    %v125 = vsub.f32 %v43, %v109
    %v126 = vsub.f32 %v44, %v110
    %v127 = vsub.f32 %v45, %v111
    %v128 = vsub.f32 %v46, %v112
    %v129 = vsub.f32 %v47, %v113
    %v130 = vsub.f32 %v48, %v114
    %v131 = vsub.f32 %v49, %v115
    %v132 = vsub.f32 %v50, %v116
    %v133 = vsub.f32 %v51, %v117
    %v134 = vsub.f32 %v52, %v118
    %v135 = vsub.f32 %v53, %v119
    %v136 = vsub.f32 %v54, %v120
    %v137 = vsub.f32 %v55, %v121
    %v138 = vsub.f32 %v56, %v122
    %v139 = vmul.f32 %v123, %v123
    %v140 = vmul.f32 %v124, %v124
    %v141 = vmul.f32 %v125, %v125
    %v142 = vmul.f32 %v126, %v126
    %v143 = vmul.f32 %v127, %v127
    %v144 = vmul.f32 %v128, %v128
    %v145 = vmul.f32 %v129, %v129
    %v146 = vmul.f32 %v130, %v130
    %v147 = vmul.f32 %v131, %v131
    %v148 = vmul.f32 %v132, %v132
    %v149 = vmul.f32 %v133, %v133
    %v150 = vmul.f32 %v134, %v134
    %v151 = vmul.f32 %v135, %v135
    %v152 = vmul.f32 %v136, %v136
    %v153 = vmul.f32 %v137, %v137
    %v154 = vmul.f32 %v138, %v138
    %v155 = vsel %vm57, %v139, 0.0
    %156 = vadd.xlane.f32.xlu0 %v155
    %v157 = vpop.xlane.xlu0 %156
    %v158 = vsel %vm57, %v140, 0.0
    %159 = vadd.xlane.f32.xlu0 %v158
    %v160 = vpop.xlane.xlu0 %159
    %v161 = vsel %vm57, %v141, 0.0
    %162 = vadd.xlane.f32.xlu0 %v161
    %v163 = vpop.xlane.xlu0 %162
    %v164 = vsel %vm57, %v142, 0.0
    %165 = vadd.xlane.f32.xlu0 %v164
    %v166 = vpop.xlane.xlu0 %165
    %v167 = vsel %vm57, %v143, 0.0
    %168 = vadd.xlane.f32.xlu0 %v167
    %v169 = vpop.xlane.xlu0 %168
    %v170 = vsel %vm57, %v144, 0.0
    %171 = vadd.xlane.f32.xlu0 %v170
    %v172 = vpop.xlane.xlu0 %171
    %v173 = vsel %vm57, %v145, 0.0
    %174 = vadd.xlane.f32.xlu0 %v173
    %v175 = vpop.xlane.xlu0 %174
    %v176 = vsel %vm57, %v146, 0.0
    %177 = vadd.xlane.f32.xlu0 %v176
    %v178 = vpop.xlane.xlu0 %177
    %v179 = vsel %vm57, %v147, 0.0
    %180 = vadd.xlane.f32.xlu0 %v179
    %v181 = vpop.xlane.xlu0 %180
    %v182 = vsel %vm57, %v148, 0.0
    %183 = vadd.xlane.f32.xlu0 %v182
    %v184 = vpop.xlane.xlu0 %183
    %v185 = vsel %vm57, %v149, 0.0
    %186 = vadd.xlane.f32.xlu0 %v185
    %v187 = vpop.xlane.xlu0 %186
    %v188 = vsel %vm57, %v150, 0.0
    %189 = vadd.xlane.f32.xlu0 %v188
    %v190 = vpop.xlane.xlu0 %189
    %v191 = vsel %vm57, %v151, 0.0
    %192 = vadd.xlane.f32.xlu0 %v191
    %v193 = vpop.xlane.xlu0 %192
    %v194 = vsel %vm57, %v152, 0.0
    %195 = vadd.xlane.f32.xlu0 %v194
    %v196 = vpop.xlane.xlu0 %195
    %v197 = vsel %vm57, %v153, 0.0
    %198 = vadd.xlane.f32.xlu0 %v197
    %v199 = vpop.xlane.xlu0 %198
    %v200 = vsel %vm57, %v154, 0.0
    %201 = vadd.xlane.f32.xlu0 %v200
    %v202 = vpop.xlane.xlu0 %201
    %v203 = vmul.f32 %v157, %v106
    %v204 = vmul.f32 %v160, %v106
    %v205 = vmul.f32 %v163, %v106
    %v206 = vmul.f32 %v166, %v106
    %v207 = vmul.f32 %v169, %v106
    %v208 = vmul.f32 %v172, %v106
    %v209 = vmul.f32 %v175, %v106
    %v210 = vmul.f32 %v178, %v106
    %v211 = vmul.f32 %v181, %v106
    %v212 = vmul.f32 %v184, %v106
    %v213 = vmul.f32 %v187, %v106
    %v214 = vmul.f32 %v190, %v106
    %v215 = vmul.f32 %v193, %v106
    %v216 = vmul.f32 %v196, %v106
    %v217 = vmul.f32 %v199, %v106
    %v218 = vmul.f32 %v202, %v106
    %v219 = vadd.f32 %v203, 1e-05
    %v220 = vadd.f32 %v204, 1e-05
    %v221 = vadd.f32 %v205, 1e-05
    %v222 = vadd.f32 %v206, 1e-05
    %v223 = vadd.f32 %v207, 1e-05
    %v224 = vadd.f32 %v208, 1e-05
    %v225 = vadd.f32 %v209, 1e-05
    %v226 = vadd.f32 %v210, 1e-05
    %v227 = vadd.f32 %v211, 1e-05
    %v228 = vadd.f32 %v212, 1e-05
    %v229 = vadd.f32 %v213, 1e-05
    %v230 = vadd.f32 %v214, 1e-05
    %v231 = vadd.f32 %v215, 1e-05
    %v232 = vadd.f32 %v216, 1e-05
    %v233 = vadd.f32 %v217, 1e-05
    %v234 = vadd.f32 %v218, 1e-05
    %v235 = vrsqrt.pop %v219
    %v236 = vrsqrt.pop %v220
    %v237 = vrsqrt.pop %v221
    %v238 = vrsqrt.pop %v222
    %v239 = vrsqrt.pop %v223
    %v240 = vrsqrt.pop %v224
    %v241 = vrsqrt.pop %v225
    %v242 = vrsqrt.pop %v226
    %v243 = vrsqrt.pop %v227
    %v244 = vrsqrt.pop %v228
    %v245 = vrsqrt.pop %v229
    %v246 = vrsqrt.pop %v230
    %v247 = vrsqrt.pop %v231
    %v248 = vrsqrt.pop %v232
    %v249 = vrsqrt.pop %v233
    %v250 = vrsqrt.pop %v234
    %v251 = vmul.f32 %v123, %v235
    %v252 = vmul.f32 %v124, %v236
    %v253 = vmul.f32 %v125, %v237
    %v254 = vmul.f32 %v126, %v238
    %v255 = vmul.f32 %v127, %v239
    %v256 = vmul.f32 %v128, %v240
    %v257 = vmul.f32 %v129, %v241
    %v258 = vmul.f32 %v130, %v242
    %v259 = vmul.f32 %v131, %v243
    %v260 = vmul.f32 %v132, %v244
    %v261 = vmul.f32 %v133, %v245
    %v262 = vmul.f32 %v134, %v246
    %v263 = vmul.f32 %v135, %v247
    %v264 = vmul.f32 %v136, %v248
    %v265 = vmul.f32 %v137, %v249
    %v266 = vmul.f32 %v138, %v250
    %v267 = vld [vmem:[%s1] sm:$0xff]
    %v268 = vld [vmem:[%s1 + $0x8] sm:$0xff]
    %v269 = vld [vmem:[%s1 + $0x10] sm:$0xff]
    %v270 = vld [vmem:[%s1 + $0x18] sm:$0xff]
    %v271 = vld [vmem:[%s1 + $0x20] sm:$0xff]
    %v272 = vld [vmem:[%s1 + $0x28] sm:$0xff]
    %v273 = vld [vmem:[%s1 + $0x30] sm:$0xff]
    %v274 = vld [vmem:[%s1 + $0x38] sm:$0xff]
    %v275 = vld [vmem:[%s2] sm:$0xff]
    %v276 = vld [vmem:[%s2 + $0x8] sm:$0xff]
    %v277 = vld [vmem:[%s2 + $0x10] sm:$0xff]
    %v278 = vld [vmem:[%s2 + $0x18] sm:$0xff]
    %v279 = vld [vmem:[%s2 + $0x20] sm:$0xff]
    %v280 = vld [vmem:[%s2 + $0x28] sm:$0xff]
    %v281 = vld [vmem:[%s2 + $0x30] sm:$0xff]
    %v282 = vld [vmem:[%s2 + $0x38] sm:$0xff]
    %284 = vset.pattern.permute.xlu0 0
    %285 = vperm.xlu0 %284, %v275
    %v286 = vpop.permute.xlu0 %285
    %289 = vset.pattern.permute.xlu0 0
    %290 = vperm.xlu0 %289, %v276
    %v291 = vpop.permute.xlu0 %290
    %294 = vset.pattern.permute.xlu0 0
    %295 = vperm.xlu0 %294, %v277
    %v296 = vpop.permute.xlu0 %295
    %299 = vset.pattern.permute.xlu0 0
    %300 = vperm.xlu0 %299, %v278
    %v301 = vpop.permute.xlu0 %300
    %304 = vset.pattern.permute.xlu0 0
    %305 = vperm.xlu0 %304, %v279
    %v306 = vpop.permute.xlu0 %305
    %309 = vset.pattern.permute.xlu0 0
    %310 = vperm.xlu0 %309, %v280
    %v311 = vpop.permute.xlu0 %310
    %314 = vset.pattern.permute.xlu0 0
    %315 = vperm.xlu0 %314, %v281
    %v316 = vpop.permute.xlu0 %315
    %319 = vset.pattern.permute.xlu0 0
    %320 = vperm.xlu0 %319, %v282
    %v321 = vpop.permute.xlu0 %320
    %v324 = vsel %vm57, %v267, 0
    %v327 = vsel %vm57, %v268, 0
    %v330 = vsel %vm57, %v269, 0
    %v333 = vsel %vm57, %v270, 0
    %v336 = vsel %vm57, %v271, 0
    %v339 = vsel %vm57, %v272, 0
    %v342 = vsel %vm57, %v273, 0
    %v345 = vsel %vm57, %v274, 0
    %v348 = vsel %vm57, %v251, 0
    %v351 = vsel %vm57, %v252, 0
    %v354 = vsel %vm57, %v253, 0
    %v357 = vsel %vm57, %v254, 0
    %v360 = vsel %vm57, %v255, 0
    %v363 = vsel %vm57, %v256, 0
    %v366 = vsel %vm57, %v257, 0
    %v369 = vsel %vm57, %v258, 0
    %v372 = vsel %vm57, %v259, 0
    %v375 = vsel %vm57, %v260, 0
    %v378 = vsel %vm57, %v261, 0
    %v381 = vsel %vm57, %v262, 0
    %v384 = vsel %vm57, %v263, 0
    %v387 = vsel %vm57, %v264, 0
    %v390 = vsel %vm57, %v265, 0
    %v393 = vsel %vm57, %v266, 0
    %395 = vmatprep.subr.mxu0 0.0
    %396 = vmatpush1.xpose.msra.mxu0 %v348
    %397 = vmatprep.subr.mxu0 0.0
    %398 = vmatpush1.xpose.msra.mxu0 %v351
    %399 = vmatprep.subr.mxu0 0.0
    %400 = vmatpush1.xpose.msra.mxu0 %v354
    %401 = vmatprep.subr.mxu0 0.0
    %402 = vmatpush1.xpose.msra.mxu0 %v357
    %403 = vmatprep.subr.mxu0 0.0
    %404 = vmatpush1.xpose.msra.mxu0 %v360
    %405 = vmatprep.subr.mxu0 0.0
    %406 = vmatpush1.xpose.msra.mxu0 %v363
    %407 = vmatprep.subr.mxu0 0.0
    %408 = vmatpush1.xpose.msra.mxu0 %v366
    %409 = vmatprep.subr.mxu0 0.0
    %410 = vmatpush1.xpose.msra.mxu0 %v369
    %411 = vmatprep.subr.mxu0 0.0
    %412 = vmatpush1.xpose.msra.mxu0 %v372
    %413 = vmatprep.subr.mxu0 0.0
    %414 = vmatpush1.xpose.msra.mxu0 %v375
    %415 = vmatprep.subr.mxu0 0.0
    %416 = vmatpush1.xpose.msra.mxu0 %v378
    %417 = vmatprep.subr.mxu0 0.0
    %418 = vmatpush1.xpose.msra.mxu0 %v381
    %419 = vmatprep.subr.mxu0 0.0
    %420 = vmatpush1.xpose.msra.mxu0 %v384
    %421 = vmatprep.subr.mxu0 0.0
    %422 = vmatpush1.xpose.msra.mxu0 %v387
    %423 = vmatprep.subr.mxu0 0.0
    %424 = vmatpush1.xpose.msra.mxu0 %v390
    %425 = vmatprep.subr.mxu0 0.0
    %426 = vmatpush1.xpose.msra.mxu0 %v393
    %427 = vmatprep.subr.mxu0 0.0
    %428 = vmatpush1.xpose.msra.mxu0 0.0
    %429 = vmatprep.subr.mxu0 0.0
    %430 = vmatpush1.xpose.msra.mxu0 0.0
    %431 = vmatprep.subr.mxu0 0.0
    %432 = vmatpush1.xpose.msra.mxu0 0.0
    %433 = vmatprep.subr.mxu0 0.0
    %434 = vmatpush1.xpose.msra.mxu0 0.0
    %435 = vmatprep.subr.mxu0 0.0
    %436 = vmatpush1.xpose.msra.mxu0 0.0
    %437 = vmatprep.subr.mxu0 0.0
    %438 = vmatpush1.xpose.msra.mxu0 0.0
    %439 = vmatprep.subr.mxu0 0.0
    %440 = vmatpush1.xpose.msra.mxu0 0.0
    %441 = vmatprep.subr.mxu0 0.0
    %442 = vmatpush1.xpose.msra.mxu0 0.0
    %443 = vmatprep.subr.mxu0 0.0
    %444 = vmatpush1.xpose.msra.mxu0 0.0
    %445 = vmatprep.subr.mxu0 0.0
    %446 = vmatpush1.xpose.msra.mxu0 0.0
    %447 = vmatprep.subr.mxu0 0.0
    %448 = vmatpush1.xpose.msra.mxu0 0.0
    %449 = vmatprep.subr.mxu0 0.0
    %450 = vmatpush1.xpose.msra.mxu0 0.0
    %451 = vmatprep.subr.mxu0 0.0
    %452 = vmatpush1.xpose.msra.mxu0 0.0
    %453 = vmatprep.subr.mxu0 0.0
    %454 = vmatpush1.xpose.msra.mxu0 0.0
    %455 = vmatprep.subr.mxu0 0.0
    %456 = vmatpush1.xpose.msra.mxu0 0.0
    %457 = vmatprep.subr.mxu0 0.0
    %458 = vmatpush1.xpose.msra.mxu0 0.0
    %459 = vmatprep.mubr.f32.mxu0 0.0
    %460 = vmatmul.mubr.f32.gmra.mrb[0].mxu0 %v324
    %v461 = vpop.f32.mrb[0].mxu0
    %v462 = vadd.f32 %v286, %v461
    %v463 = vpop.f32.mrb[0].mxu0
    %464 = vmatprep.mubr.f32.mxu0 0.0
    %465 = vmatmul.mubr.f32.gmra.mrb[0].mxu0 %v327
    %v466 = vpop.f32.mrb[0].mxu0
    %v467 = vadd.f32 %v291, %v466
    %v468 = vpop.f32.mrb[0].mxu0
    %469 = vmatprep.mubr.f32.mxu0 0.0
    %470 = vmatmul.mubr.f32.gmra.mrb[0].mxu0 %v330
    %v471 = vpop.f32.mrb[0].mxu0
    %v472 = vadd.f32 %v296, %v471
    %v473 = vpop.f32.mrb[0].mxu0
    %474 = vmatprep.mubr.f32.mxu0 0.0
    %475 = vmatmul.mubr.f32.gmra.mrb[0].mxu0 %v333
    %v476 = vpop.f32.mrb[0].mxu0
    %v477 = vadd.f32 %v301, %v476
    %v478 = vpop.f32.mrb[0].mxu0
    %479 = vmatprep.mubr.f32.mxu0 0.0
    %480 = vmatmul.mubr.f32.gmra.mrb[0].mxu0 %v336
    %v481 = vpop.f32.mrb[0].mxu0
    %v482 = vadd.f32 %v306, %v481
    %v483 = vpop.f32.mrb[0].mxu0
    %484 = vmatprep.mubr.f32.mxu0 0.0
    %485 = vmatmul.mubr.f32.gmra.mrb[0].mxu0 %v339
    %v486 = vpop.f32.mrb[0].mxu0
    %v487 = vadd.f32 %v311, %v486
    %v488 = vpop.f32.mrb[0].mxu0
    %489 = vmatprep.mubr.f32.mxu0 0.0
    %490 = vmatmul.mubr.f32.gmra.mrb[0].mxu0 %v342
    %v491 = vpop.f32.mrb[0].mxu0
    %v492 = vadd.f32 %v316, %v491
    %v493 = vpop.f32.mrb[0].mxu0
    %494 = vmatprep.mubr.f32.mxu0 0.0
    %495 = vmatmul.mubr.f32.gmra.mrb[0].mxu0 %v345
    %v496 = vpop.f32.mrb[0].mxu0
    %v497 = vadd.f32 %v321, %v496
    %v498 = vpop.f32.mrb[0].mxu0
    %499 = vdwg.mxu0
    %v500 = vmul.f32 %v482, 0.5
    %v501 = vmul.f32 %v487, 0.5
    %v502 = vmul.f32 %v492, 0.5
    %v503 = vmul.f32 %v497, 0.5
    %v504 = vtanh.pop %v500
    %v505 = vtanh.pop %v501
    %v506 = vtanh.pop %v502
    %v507 = vtanh.pop %v503
    %v508 = vadd.f32 %v504, 1.0
    %v509 = vadd.f32 %v505, 1.0
    %v510 = vadd.f32 %v506, 1.0
    %v511 = vadd.f32 %v507, 1.0
    %v512 = vmul.f32 %v508, 0.5
    %v513 = vmul.f32 %v509, 0.5
    %v514 = vmul.f32 %v510, 0.5
    %v515 = vmul.f32 %v511, 0.5
    %v516 = vmul.f32 %v462, %v512
    %v517 = vmul.f32 %v467, %v513
    %v518 = vmul.f32 %v472, %v514
    %v519 = vmul.f32 %v477, %v515
    %520 = vrot.lane.b32.xlu0 %v516, 15
    %v521 = vpop.permute.xlu0 %520
    %522 = vrot.lane.b32.xlu0 %v517, 15
    %v523 = vpop.permute.xlu0 %522
    %524 = vrot.lane.b32.xlu0 %v518, 15
    %v525 = vpop.permute.xlu0 %524
    %526 = vrot.lane.b32.xlu0 %v519, 15
    %v527 = vpop.permute.xlu0 %526
    %v528 = vld [vmem:[#allocation2] sm:$0xff]
    %v529 = vld [vmem:[#allocation2 + $0x8] sm:$0xff]
    %v530 = vld [vmem:[#allocation2 + $0x10] sm:$0xff]
    %v531 = vld [vmem:[#allocation2 + $0x18] sm:$0xff]
    %v532 = vmul.f32 %v521, %v528
    %v533 = vmul.f32 %v523, %v529
    %v534 = vmul.f32 %v525, %v530
    %v535 = vmul.f32 %v527, %v531
    %536 = vrot.lane.b32.xlu0 %v516, 14
    %v537 = vpop.permute.xlu0 %536
    %538 = vrot.lane.b32.xlu0 %v517, 14
    %v539 = vpop.permute.xlu0 %538
    %540 = vrot.lane.b32.xlu0 %v518, 14
    %v541 = vpop.permute.xlu0 %540
    %542 = vrot.lane.b32.xlu0 %v519, 14
    %v543 = vpop.permute.xlu0 %542
    %s544 = scalar_lea.vmem [#allocation2], 32
    %v545 = vld [vmem:[%s544] sm:$0xff]
    %v546 = vld [vmem:[%s544 + $0x8] sm:$0xff]
    %v547 = vld [vmem:[%s544 + $0x10] sm:$0xff]
    %v548 = vld [vmem:[%s544 + $0x18] sm:$0xff]
    %v549 = vmul.f32 %v537, %v545
    %v550 = vmul.f32 %v539, %v546
    %v551 = vmul.f32 %v541, %v547
    %v552 = vmul.f32 %v543, %v548
    %553 = vrot.lane.b32.xlu0 %v516, 13
    %v554 = vpop.permute.xlu0 %553
    %555 = vrot.lane.b32.xlu0 %v517, 13
    %v556 = vpop.permute.xlu0 %555
    %557 = vrot.lane.b32.xlu0 %v518, 13
    %v558 = vpop.permute.xlu0 %557
    %559 = vrot.lane.b32.xlu0 %v519, 13
    %v560 = vpop.permute.xlu0 %559
    %s561 = scalar_lea.vmem [#allocation2], 64
    %v562 = vld [vmem:[%s561] sm:$0xff]
    %v563 = vld [vmem:[%s561 + $0x8] sm:$0xff]
    %v564 = vld [vmem:[%s561 + $0x10] sm:$0xff]
    %v565 = vld [vmem:[%s561 + $0x18] sm:$0xff]
    %v566 = vmul.f32 %v554, %v562
    %v567 = vmul.f32 %v556, %v563
    %v568 = vmul.f32 %v558, %v564
    %v569 = vmul.f32 %v560, %v565
    %570 = vrot.lane.b32.xlu0 %v516, 12
    %v571 = vpop.permute.xlu0 %570
    %572 = vrot.lane.b32.xlu0 %v517, 12
    %v573 = vpop.permute.xlu0 %572
    %574 = vrot.lane.b32.xlu0 %v518, 12
    %v575 = vpop.permute.xlu0 %574
    %576 = vrot.lane.b32.xlu0 %v519, 12
    %v577 = vpop.permute.xlu0 %576
    %s578 = scalar_lea.vmem [#allocation2], 96
    %v579 = vld [vmem:[%s578] sm:$0xff]
    %v580 = vld [vmem:[%s578 + $0x8] sm:$0xff]
    %v581 = vld [vmem:[%s578 + $0x10] sm:$0xff]
    %v582 = vld [vmem:[%s578 + $0x18] sm:$0xff]
    %v583 = vmul.f32 %v571, %v579
    %v584 = vmul.f32 %v573, %v580
    %v585 = vmul.f32 %v575, %v581
    %v586 = vmul.f32 %v577, %v582
    %587 = vrot.lane.b32.xlu0 %v516, 11
    %v588 = vpop.permute.xlu0 %587
    %589 = vrot.lane.b32.xlu0 %v517, 11
    %v590 = vpop.permute.xlu0 %589
    %591 = vrot.lane.b32.xlu0 %v518, 11
    %v592 = vpop.permute.xlu0 %591
    %593 = vrot.lane.b32.xlu0 %v519, 11
    %v594 = vpop.permute.xlu0 %593
    %s595 = scalar_lea.vmem [#allocation2], 128
    %v596 = vld [vmem:[%s595] sm:$0xff]
    %v597 = vld [vmem:[%s595 + $0x8] sm:$0xff]
    %v598 = vld [vmem:[%s595 + $0x10] sm:$0xff]
    %v599 = vld [vmem:[%s595 + $0x18] sm:$0xff]
    %v600 = vmul.f32 %v588, %v596
    %v601 = vmul.f32 %v590, %v597
    %v602 = vmul.f32 %v592, %v598
    %v603 = vmul.f32 %v594, %v599
    %v604 = vadd.f32 %v532, %v600
    %v605 = vadd.f32 %v533, %v601
    %v606 = vadd.f32 %v534, %v602
    %v607 = vadd.f32 %v535, %v603
    %608 = vrot.lane.b32.xlu0 %v516, 10
    %v609 = vpop.permute.xlu0 %608
    %610 = vrot.lane.b32.xlu0 %v517, 10
    %v611 = vpop.permute.xlu0 %610
    %612 = vrot.lane.b32.xlu0 %v518, 10
    %v613 = vpop.permute.xlu0 %612
    %614 = vrot.lane.b32.xlu0 %v519, 10
    %v615 = vpop.permute.xlu0 %614
    %s616 = scalar_lea.vmem [#allocation2], 160
    %v617 = vld [vmem:[%s616] sm:$0xff]
    %v618 = vld [vmem:[%s616 + $0x8] sm:$0xff]
    %v619 = vld [vmem:[%s616 + $0x10] sm:$0xff]
    %v620 = vld [vmem:[%s616 + $0x18] sm:$0xff]
    %v621 = vmul.f32 %v609, %v617
    %v622 = vmul.f32 %v611, %v618
    %v623 = vmul.f32 %v613, %v619
    %v624 = vmul.f32 %v615, %v620
    %v625 = vadd.f32 %v549, %v621
    %v626 = vadd.f32 %v550, %v622
    %v627 = vadd.f32 %v551, %v623
    %v628 = vadd.f32 %v552, %v624
    %629 = vrot.lane.b32.xlu0 %v516, 9
    %v630 = vpop.permute.xlu0 %629
    %631 = vrot.lane.b32.xlu0 %v517, 9
    %v632 = vpop.permute.xlu0 %631
    %633 = vrot.lane.b32.xlu0 %v518, 9
    %v634 = vpop.permute.xlu0 %633
    %635 = vrot.lane.b32.xlu0 %v519, 9
    %v636 = vpop.permute.xlu0 %635
    %s637 = scalar_lea.vmem [#allocation2], 192
    %v638 = vld [vmem:[%s637] sm:$0xff]
    %v639 = vld [vmem:[%s637 + $0x8] sm:$0xff]
    %v640 = vld [vmem:[%s637 + $0x10] sm:$0xff]
    %v641 = vld [vmem:[%s637 + $0x18] sm:$0xff]
    %v642 = vmul.f32 %v630, %v638
    %v643 = vmul.f32 %v632, %v639
    %v644 = vmul.f32 %v634, %v640
    %v645 = vmul.f32 %v636, %v641
    %v646 = vadd.f32 %v566, %v642
    %v647 = vadd.f32 %v567, %v643
    %v648 = vadd.f32 %v568, %v644
    %v649 = vadd.f32 %v569, %v645
    %650 = vrot.lane.b32.xlu0 %v516, 8
    %v651 = vpop.permute.xlu0 %650
    %652 = vrot.lane.b32.xlu0 %v517, 8
    %v653 = vpop.permute.xlu0 %652
    %654 = vrot.lane.b32.xlu0 %v518, 8
    %v655 = vpop.permute.xlu0 %654
    %656 = vrot.lane.b32.xlu0 %v519, 8
    %v657 = vpop.permute.xlu0 %656
    %s658 = scalar_lea.vmem [#allocation2], 224
    %v659 = vld [vmem:[%s658] sm:$0xff]
    %v660 = vld [vmem:[%s658 + $0x8] sm:$0xff]
    %v661 = vld [vmem:[%s658 + $0x10] sm:$0xff]
    %v662 = vld [vmem:[%s658 + $0x18] sm:$0xff]
    %v663 = vmul.f32 %v651, %v659
    %v664 = vmul.f32 %v653, %v660
    %v665 = vmul.f32 %v655, %v661
    %v666 = vmul.f32 %v657, %v662
    %v667 = vadd.f32 %v583, %v663
    %v668 = vadd.f32 %v584, %v664
    %v669 = vadd.f32 %v585, %v665
    %v670 = vadd.f32 %v586, %v666
    %671 = vrot.lane.b32.xlu0 %v516, 7
    %v672 = vpop.permute.xlu0 %671
    %673 = vrot.lane.b32.xlu0 %v517, 7
    %v674 = vpop.permute.xlu0 %673
    %675 = vrot.lane.b32.xlu0 %v518, 7
    %v676 = vpop.permute.xlu0 %675
    %677 = vrot.lane.b32.xlu0 %v519, 7
    %v678 = vpop.permute.xlu0 %677
    %s679 = scalar_lea.vmem [#allocation2], 256
    %v680 = vld [vmem:[%s679] sm:$0xff]
    %v681 = vld [vmem:[%s679 + $0x8] sm:$0xff]
    %v682 = vld [vmem:[%s679 + $0x10] sm:$0xff]
    %v683 = vld [vmem:[%s679 + $0x18] sm:$0xff]
    %v684 = vmul.f32 %v672, %v680
    %v685 = vmul.f32 %v674, %v681
    %v686 = vmul.f32 %v676, %v682
    %v687 = vmul.f32 %v678, %v683
    %v688 = vadd.f32 %v604, %v684
    %v689 = vadd.f32 %v605, %v685
    %v690 = vadd.f32 %v606, %v686
    %v691 = vadd.f32 %v607, %v687
    %692 = vrot.lane.b32.xlu0 %v516, 6
    %v693 = vpop.permute.xlu0 %692
    %694 = vrot.lane.b32.xlu0 %v517, 6
    %v695 = vpop.permute.xlu0 %694
    %696 = vrot.lane.b32.xlu0 %v518, 6
    %v697 = vpop.permute.xlu0 %696
    %698 = vrot.lane.b32.xlu0 %v519, 6
    %v699 = vpop.permute.xlu0 %698
    %s700 = scalar_lea.vmem [#allocation2], 288
    %v701 = vld [vmem:[%s700] sm:$0xff]
    %v702 = vld [vmem:[%s700 + $0x8] sm:$0xff]
    %v703 = vld [vmem:[%s700 + $0x10] sm:$0xff]
    %v704 = vld [vmem:[%s700 + $0x18] sm:$0xff]
    %v705 = vmul.f32 %v693, %v701
    %v706 = vmul.f32 %v695, %v702
    %v707 = vmul.f32 %v697, %v703
    %v708 = vmul.f32 %v699, %v704
    %v709 = vadd.f32 %v625, %v705
    %v710 = vadd.f32 %v626, %v706
    %v711 = vadd.f32 %v627, %v707
    %v712 = vadd.f32 %v628, %v708
    %713 = vrot.lane.b32.xlu0 %v516, 5
    %v714 = vpop.permute.xlu0 %713
    %715 = vrot.lane.b32.xlu0 %v517, 5
    %v716 = vpop.permute.xlu0 %715
    %717 = vrot.lane.b32.xlu0 %v518, 5
    %v718 = vpop.permute.xlu0 %717
    %719 = vrot.lane.b32.xlu0 %v519, 5
    %v720 = vpop.permute.xlu0 %719
    %s721 = scalar_lea.vmem [#allocation2], 320
    %v722 = vld [vmem:[%s721] sm:$0xff]
    %v723 = vld [vmem:[%s721 + $0x8] sm:$0xff]
    %v724 = vld [vmem:[%s721 + $0x10] sm:$0xff]
    %v725 = vld [vmem:[%s721 + $0x18] sm:$0xff]
    %v726 = vmul.f32 %v714, %v722
    %v727 = vmul.f32 %v716, %v723
    %v728 = vmul.f32 %v718, %v724
    %v729 = vmul.f32 %v720, %v725
    %v730 = vadd.f32 %v646, %v726
    %v731 = vadd.f32 %v647, %v727
    %v732 = vadd.f32 %v648, %v728
    %v733 = vadd.f32 %v649, %v729
    %734 = vrot.lane.b32.xlu0 %v516, 4
    %v735 = vpop.permute.xlu0 %734
    %736 = vrot.lane.b32.xlu0 %v517, 4
    %v737 = vpop.permute.xlu0 %736
    %738 = vrot.lane.b32.xlu0 %v518, 4
    %v739 = vpop.permute.xlu0 %738
    %740 = vrot.lane.b32.xlu0 %v519, 4
    %v741 = vpop.permute.xlu0 %740
    %s742 = scalar_lea.vmem [#allocation2], 352
    %v743 = vld [vmem:[%s742] sm:$0xff]
    %v744 = vld [vmem:[%s742 + $0x8] sm:$0xff]
    %v745 = vld [vmem:[%s742 + $0x10] sm:$0xff]
    %v746 = vld [vmem:[%s742 + $0x18] sm:$0xff]
    %v747 = vmul.f32 %v735, %v743
    %v748 = vmul.f32 %v737, %v744
    %v749 = vmul.f32 %v739, %v745
    %v750 = vmul.f32 %v741, %v746
    %v751 = vadd.f32 %v667, %v747
    %v752 = vadd.f32 %v668, %v748
    %v753 = vadd.f32 %v669, %v749
    %v754 = vadd.f32 %v670, %v750
    %755 = vrot.lane.b32.xlu0 %v516, 3
    %v756 = vpop.permute.xlu0 %755
    %757 = vrot.lane.b32.xlu0 %v517, 3
    %v758 = vpop.permute.xlu0 %757
    %759 = vrot.lane.b32.xlu0 %v518, 3
    %v760 = vpop.permute.xlu0 %759
    %761 = vrot.lane.b32.xlu0 %v519, 3
    %v762 = vpop.permute.xlu0 %761
    %s763 = scalar_lea.vmem [#allocation2], 384
    %v764 = vld [vmem:[%s763] sm:$0xff]
    %v765 = vld [vmem:[%s763 + $0x8] sm:$0xff]
    %v766 = vld [vmem:[%s763 + $0x10] sm:$0xff]
    %v767 = vld [vmem:[%s763 + $0x18] sm:$0xff]
    %v768 = vmul.f32 %v756, %v764
    %v769 = vmul.f32 %v758, %v765
    %v770 = vmul.f32 %v760, %v766
    %v771 = vmul.f32 %v762, %v767
    %v772 = vadd.f32 %v688, %v768
    %v773 = vadd.f32 %v689, %v769
    %v774 = vadd.f32 %v690, %v770
    %v775 = vadd.f32 %v691, %v771
    %776 = vrot.lane.b32.xlu0 %v516, 2
    %v777 = vpop.permute.xlu0 %776
    %778 = vrot.lane.b32.xlu0 %v517, 2
    %v779 = vpop.permute.xlu0 %778
    %780 = vrot.lane.b32.xlu0 %v518, 2
    %v781 = vpop.permute.xlu0 %780
    %782 = vrot.lane.b32.xlu0 %v519, 2
    %v783 = vpop.permute.xlu0 %782
    %s784 = scalar_lea.vmem [#allocation2], 416
    %v785 = vld [vmem:[%s784] sm:$0xff]
    %v786 = vld [vmem:[%s784 + $0x8] sm:$0xff]
    %v787 = vld [vmem:[%s784 + $0x10] sm:$0xff]
    %v788 = vld [vmem:[%s784 + $0x18] sm:$0xff]
    %v789 = vmul.f32 %v777, %v785
    %v790 = vmul.f32 %v779, %v786
    %v791 = vmul.f32 %v781, %v787
    %v792 = vmul.f32 %v783, %v788
    %v793 = vadd.f32 %v709, %v789
    %v794 = vadd.f32 %v710, %v790
    %v795 = vadd.f32 %v711, %v791
    %v796 = vadd.f32 %v712, %v792
    %797 = vrot.lane.b32.xlu0 %v516, 1
    %v798 = vpop.permute.xlu0 %797
    %799 = vrot.lane.b32.xlu0 %v517, 1
    %v800 = vpop.permute.xlu0 %799
    %801 = vrot.lane.b32.xlu0 %v518, 1
    %v802 = vpop.permute.xlu0 %801
    %803 = vrot.lane.b32.xlu0 %v519, 1
    %v804 = vpop.permute.xlu0 %803
    %s805 = scalar_lea.vmem [#allocation2], 448
    %v806 = vld [vmem:[%s805] sm:$0xff]
    %v807 = vld [vmem:[%s805 + $0x8] sm:$0xff]
    %v808 = vld [vmem:[%s805 + $0x10] sm:$0xff]
    %v809 = vld [vmem:[%s805 + $0x18] sm:$0xff]
    %v810 = vmul.f32 %v798, %v806
    %v811 = vmul.f32 %v800, %v807
    %v812 = vmul.f32 %v802, %v808
    %v813 = vmul.f32 %v804, %v809
    %v814 = vadd.f32 %v730, %v810
    %v815 = vadd.f32 %v731, %v811
    %v816 = vadd.f32 %v732, %v812
    %v817 = vadd.f32 %v733, %v813
    %s818 = scalar_lea.vmem [#allocation2], 480
    %v819 = vld [vmem:[%s818] sm:$0xff]
    %v820 = vld [vmem:[%s818 + $0x8] sm:$0xff]
    %v821 = vld [vmem:[%s818 + $0x10] sm:$0xff]
    %v822 = vld [vmem:[%s818 + $0x18] sm:$0xff]
    %v823 = vmul.f32 %v516, %v819
    %v824 = vmul.f32 %v517, %v820
    %v825 = vmul.f32 %v518, %v821
    %v826 = vmul.f32 %v519, %v822
    %v827 = vadd.f32 %v751, %v823
    %v828 = vadd.f32 %v752, %v824
    %v829 = vadd.f32 %v753, %v825
    %v830 = vadd.f32 %v754, %v826
    %831 = vrot.lane.b32.xlu0 %v516, 127
    %v832 = vpop.permute.xlu0 %831
    %833 = vrot.lane.b32.xlu0 %v517, 127
    %v834 = vpop.permute.xlu0 %833
    %835 = vrot.lane.b32.xlu0 %v518, 127
    %v836 = vpop.permute.xlu0 %835
    %837 = vrot.lane.b32.xlu0 %v519, 127
    %v838 = vpop.permute.xlu0 %837
    %s839 = scalar_lea.vmem [#allocation2], 512
    %v840 = vld [vmem:[%s839] sm:$0xff]
    %v841 = vld [vmem:[%s839 + $0x8] sm:$0xff]
    %v842 = vld [vmem:[%s839 + $0x10] sm:$0xff]
    %v843 = vld [vmem:[%s839 + $0x18] sm:$0xff]
    %v844 = vmul.f32 %v832, %v840
    %v845 = vmul.f32 %v834, %v841
    %v846 = vmul.f32 %v836, %v842
    %v847 = vmul.f32 %v838, %v843
    %v848 = vadd.f32 %v772, %v844
    %v849 = vadd.f32 %v773, %v845
    %v850 = vadd.f32 %v774, %v846
    %v851 = vadd.f32 %v775, %v847
    %852 = vrot.lane.b32.xlu0 %v516, 126
    %v853 = vpop.permute.xlu0 %852
    %854 = vrot.lane.b32.xlu0 %v517, 126
    %v855 = vpop.permute.xlu0 %854
    %856 = vrot.lane.b32.xlu0 %v518, 126
    %v857 = vpop.permute.xlu0 %856
    %858 = vrot.lane.b32.xlu0 %v519, 126
    %v859 = vpop.permute.xlu0 %858
    %s860 = scalar_lea.vmem [#allocation2], 544
    %v861 = vld [vmem:[%s860] sm:$0xff]
    %v862 = vld [vmem:[%s860 + $0x8] sm:$0xff]
    %v863 = vld [vmem:[%s860 + $0x10] sm:$0xff]
    %v864 = vld [vmem:[%s860 + $0x18] sm:$0xff]
    %v865 = vmul.f32 %v853, %v861
    %v866 = vmul.f32 %v855, %v862
    %v867 = vmul.f32 %v857, %v863
    %v868 = vmul.f32 %v859, %v864
    %v869 = vadd.f32 %v793, %v865
    %v870 = vadd.f32 %v794, %v866
    %v871 = vadd.f32 %v795, %v867
    %v872 = vadd.f32 %v796, %v868
    %873 = vrot.lane.b32.xlu0 %v516, 125
    %v874 = vpop.permute.xlu0 %873
    %875 = vrot.lane.b32.xlu0 %v517, 125
    %v876 = vpop.permute.xlu0 %875
    %877 = vrot.lane.b32.xlu0 %v518, 125
    %v878 = vpop.permute.xlu0 %877
    %879 = vrot.lane.b32.xlu0 %v519, 125
    %v880 = vpop.permute.xlu0 %879
    %s881 = scalar_lea.vmem [#allocation2], 576
    %v882 = vld [vmem:[%s881] sm:$0xff]
    %v883 = vld [vmem:[%s881 + $0x8] sm:$0xff]
    %v884 = vld [vmem:[%s881 + $0x10] sm:$0xff]
    %v885 = vld [vmem:[%s881 + $0x18] sm:$0xff]
    %v886 = vmul.f32 %v874, %v882
    %v887 = vmul.f32 %v876, %v883
    %v888 = vmul.f32 %v878, %v884
    %v889 = vmul.f32 %v880, %v885
    %v890 = vadd.f32 %v814, %v886
    %v891 = vadd.f32 %v815, %v887
    %v892 = vadd.f32 %v816, %v888
    %v893 = vadd.f32 %v817, %v889
    %894 = vrot.lane.b32.xlu0 %v516, 124
    %v895 = vpop.permute.xlu0 %894
    %896 = vrot.lane.b32.xlu0 %v517, 124
    %v897 = vpop.permute.xlu0 %896
    %898 = vrot.lane.b32.xlu0 %v518, 124
    %v899 = vpop.permute.xlu0 %898
    %900 = vrot.lane.b32.xlu0 %v519, 124
    %v901 = vpop.permute.xlu0 %900
    %s902 = scalar_lea.vmem [#allocation2], 608
    %v903 = vld [vmem:[%s902] sm:$0xff]
    %v904 = vld [vmem:[%s902 + $0x8] sm:$0xff]
    %v905 = vld [vmem:[%s902 + $0x10] sm:$0xff]
    %v906 = vld [vmem:[%s902 + $0x18] sm:$0xff]
    %v907 = vmul.f32 %v895, %v903
    %v908 = vmul.f32 %v897, %v904
    %v909 = vmul.f32 %v899, %v905
    %v910 = vmul.f32 %v901, %v906
    %v911 = vadd.f32 %v827, %v907
    %v912 = vadd.f32 %v828, %v908
    %v913 = vadd.f32 %v829, %v909
    %v914 = vadd.f32 %v830, %v910
    %915 = vrot.lane.b32.xlu0 %v516, 123
    %v916 = vpop.permute.xlu0 %915
    %917 = vrot.lane.b32.xlu0 %v517, 123
    %v918 = vpop.permute.xlu0 %917
    %919 = vrot.lane.b32.xlu0 %v518, 123
    %v920 = vpop.permute.xlu0 %919
    %921 = vrot.lane.b32.xlu0 %v519, 123
    %v922 = vpop.permute.xlu0 %921
    %s923 = scalar_lea.vmem [#allocation2], 640
    %v924 = vld [vmem:[%s923] sm:$0xff]
    %v925 = vld [vmem:[%s923 + $0x8] sm:$0xff]
    %v926 = vld [vmem:[%s923 + $0x10] sm:$0xff]
    %v927 = vld [vmem:[%s923 + $0x18] sm:$0xff]
    %v928 = vmul.f32 %v916, %v924
    %v929 = vmul.f32 %v918, %v925
    %v930 = vmul.f32 %v920, %v926
    %v931 = vmul.f32 %v922, %v927
    %v932 = vadd.f32 %v848, %v928
    %v933 = vadd.f32 %v849, %v929
    %v934 = vadd.f32 %v850, %v930
    %v935 = vadd.f32 %v851, %v931
    %936 = vrot.lane.b32.xlu0 %v516, 122
    %v937 = vpop.permute.xlu0 %936
    %938 = vrot.lane.b32.xlu0 %v517, 122
    %v939 = vpop.permute.xlu0 %938
    %940 = vrot.lane.b32.xlu0 %v518, 122
    %v941 = vpop.permute.xlu0 %940
    %942 = vrot.lane.b32.xlu0 %v519, 122
    %v943 = vpop.permute.xlu0 %942
    %s944 = scalar_lea.vmem [#allocation2], 672
    %v945 = vld [vmem:[%s944] sm:$0xff]
    %v946 = vld [vmem:[%s944 + $0x8] sm:$0xff]
    %v947 = vld [vmem:[%s944 + $0x10] sm:$0xff]
    %v948 = vld [vmem:[%s944 + $0x18] sm:$0xff]
    %v949 = vmul.f32 %v937, %v945
    %v950 = vmul.f32 %v939, %v946
    %v951 = vmul.f32 %v941, %v947
    %v952 = vmul.f32 %v943, %v948
    %v953 = vadd.f32 %v869, %v949
    %v954 = vadd.f32 %v870, %v950
    %v955 = vadd.f32 %v871, %v951
    %v956 = vadd.f32 %v872, %v952
    %957 = vrot.lane.b32.xlu0 %v516, 121
    %v958 = vpop.permute.xlu0 %957
    %959 = vrot.lane.b32.xlu0 %v517, 121
    %v960 = vpop.permute.xlu0 %959
    %961 = vrot.lane.b32.xlu0 %v518, 121
    %v962 = vpop.permute.xlu0 %961
    %963 = vrot.lane.b32.xlu0 %v519, 121
    %v964 = vpop.permute.xlu0 %963
    %s965 = scalar_lea.vmem [#allocation2], 704
    %v966 = vld [vmem:[%s965] sm:$0xff]
    %v967 = vld [vmem:[%s965 + $0x8] sm:$0xff]
    %v968 = vld [vmem:[%s965 + $0x10] sm:$0xff]
    %v969 = vld [vmem:[%s965 + $0x18] sm:$0xff]
    %v970 = vmul.f32 %v958, %v966
    %v971 = vmul.f32 %v960, %v967
    %v972 = vmul.f32 %v962, %v968
    %v973 = vmul.f32 %v964, %v969
    %v974 = vadd.f32 %v890, %v970
    %v975 = vadd.f32 %v891, %v971
    %v976 = vadd.f32 %v892, %v972
    %v977 = vadd.f32 %v893, %v973
    %978 = vrot.lane.b32.xlu0 %v516, 120
    %v979 = vpop.permute.xlu0 %978
    %980 = vrot.lane.b32.xlu0 %v517, 120
    %v981 = vpop.permute.xlu0 %980
    %982 = vrot.lane.b32.xlu0 %v518, 120
    %v983 = vpop.permute.xlu0 %982
    %984 = vrot.lane.b32.xlu0 %v519, 120
    %v985 = vpop.permute.xlu0 %984
    %s986 = scalar_lea.vmem [#allocation2], 736
    %v987 = vld [vmem:[%s986] sm:$0xff]
    %v988 = vld [vmem:[%s986 + $0x8] sm:$0xff]
    %v989 = vld [vmem:[%s986 + $0x10] sm:$0xff]
    %v990 = vld [vmem:[%s986 + $0x18] sm:$0xff]
    %v991 = vmul.f32 %v979, %v987
    %v992 = vmul.f32 %v981, %v988
    %v993 = vmul.f32 %v983, %v989
    %v994 = vmul.f32 %v985, %v990
    %v995 = vadd.f32 %v911, %v991
    %v996 = vadd.f32 %v912, %v992
    %v997 = vadd.f32 %v913, %v993
    %v998 = vadd.f32 %v914, %v994
    %999 = vrot.lane.b32.xlu0 %v516, 119
    %v1000 = vpop.permute.xlu0 %999
    %1001 = vrot.lane.b32.xlu0 %v517, 119
    %v1002 = vpop.permute.xlu0 %1001
    %1003 = vrot.lane.b32.xlu0 %v518, 119
    %v1004 = vpop.permute.xlu0 %1003
    %1005 = vrot.lane.b32.xlu0 %v519, 119
    %v1006 = vpop.permute.xlu0 %1005
    %s1007 = scalar_lea.vmem [#allocation2], 768
    %v1008 = vld [vmem:[%s1007] sm:$0xff]
    %v1009 = vld [vmem:[%s1007 + $0x8] sm:$0xff]
    %v1010 = vld [vmem:[%s1007 + $0x10] sm:$0xff]
    %v1011 = vld [vmem:[%s1007 + $0x18] sm:$0xff]
    %v1012 = vmul.f32 %v1000, %v1008
    %v1013 = vmul.f32 %v1002, %v1009
    %v1014 = vmul.f32 %v1004, %v1010
    %v1015 = vmul.f32 %v1006, %v1011
    %v1016 = vadd.f32 %v932, %v1012
    %v1017 = vadd.f32 %v933, %v1013
    %v1018 = vadd.f32 %v934, %v1014
    %v1019 = vadd.f32 %v935, %v1015
    %1020 = vrot.lane.b32.xlu0 %v516, 118
    %v1021 = vpop.permute.xlu0 %1020
    %1022 = vrot.lane.b32.xlu0 %v517, 118
    %v1023 = vpop.permute.xlu0 %1022
    %1024 = vrot.lane.b32.xlu0 %v518, 118
    %v1025 = vpop.permute.xlu0 %1024
    %1026 = vrot.lane.b32.xlu0 %v519, 118
    %v1027 = vpop.permute.xlu0 %1026
    %s1028 = scalar_lea.vmem [#allocation2], 800
    %v1029 = vld [vmem:[%s1028] sm:$0xff]
    %v1030 = vld [vmem:[%s1028 + $0x8] sm:$0xff]
    %v1031 = vld [vmem:[%s1028 + $0x10] sm:$0xff]
    %v1032 = vld [vmem:[%s1028 + $0x18] sm:$0xff]
    %v1033 = vmul.f32 %v1021, %v1029
    %v1034 = vmul.f32 %v1023, %v1030
    %v1035 = vmul.f32 %v1025, %v1031
    %v1036 = vmul.f32 %v1027, %v1032
    %v1037 = vadd.f32 %v953, %v1033
    %v1038 = vadd.f32 %v954, %v1034
    %v1039 = vadd.f32 %v955, %v1035
    %v1040 = vadd.f32 %v956, %v1036
    %1041 = vrot.lane.b32.xlu0 %v516, 117
    %v1042 = vpop.permute.xlu0 %1041
    %1043 = vrot.lane.b32.xlu0 %v517, 117
    %v1044 = vpop.permute.xlu0 %1043
    %1045 = vrot.lane.b32.xlu0 %v518, 117
    %v1046 = vpop.permute.xlu0 %1045
    %1047 = vrot.lane.b32.xlu0 %v519, 117
    %v1048 = vpop.permute.xlu0 %1047
    %s1049 = scalar_lea.vmem [#allocation2], 832
    %v1050 = vld [vmem:[%s1049] sm:$0xff]
    %v1051 = vld [vmem:[%s1049 + $0x8] sm:$0xff]
    %v1052 = vld [vmem:[%s1049 + $0x10] sm:$0xff]
    %v1053 = vld [vmem:[%s1049 + $0x18] sm:$0xff]
    %v1054 = vmul.f32 %v1042, %v1050
    %v1055 = vmul.f32 %v1044, %v1051
    %v1056 = vmul.f32 %v1046, %v1052
    %v1057 = vmul.f32 %v1048, %v1053
    %v1058 = vadd.f32 %v974, %v1054
    %v1059 = vadd.f32 %v975, %v1055
    %v1060 = vadd.f32 %v976, %v1056
    %v1061 = vadd.f32 %v977, %v1057
    %1062 = vrot.lane.b32.xlu0 %v516, 116
    %v1063 = vpop.permute.xlu0 %1062
    %1064 = vrot.lane.b32.xlu0 %v517, 116
    %v1065 = vpop.permute.xlu0 %1064
    %1066 = vrot.lane.b32.xlu0 %v518, 116
    %v1067 = vpop.permute.xlu0 %1066
    %1068 = vrot.lane.b32.xlu0 %v519, 116
    %v1069 = vpop.permute.xlu0 %1068
    %s1070 = scalar_lea.vmem [#allocation2], 864
    %v1071 = vld [vmem:[%s1070] sm:$0xff]
    %v1072 = vld [vmem:[%s1070 + $0x8] sm:$0xff]
    %v1073 = vld [vmem:[%s1070 + $0x10] sm:$0xff]
    %v1074 = vld [vmem:[%s1070 + $0x18] sm:$0xff]
    %v1075 = vmul.f32 %v1063, %v1071
    %v1076 = vmul.f32 %v1065, %v1072
    %v1077 = vmul.f32 %v1067, %v1073
    %v1078 = vmul.f32 %v1069, %v1074
    %v1079 = vadd.f32 %v995, %v1075
    %v1080 = vadd.f32 %v996, %v1076
    %v1081 = vadd.f32 %v997, %v1077
    %v1082 = vadd.f32 %v998, %v1078
    %1083 = vrot.lane.b32.xlu0 %v516, 115
    %v1084 = vpop.permute.xlu0 %1083
    %1085 = vrot.lane.b32.xlu0 %v517, 115
    %v1086 = vpop.permute.xlu0 %1085
    %1087 = vrot.lane.b32.xlu0 %v518, 115
    %v1088 = vpop.permute.xlu0 %1087
    %1089 = vrot.lane.b32.xlu0 %v519, 115
    %v1090 = vpop.permute.xlu0 %1089
    %s1091 = scalar_lea.vmem [#allocation2], 896
    %v1092 = vld [vmem:[%s1091] sm:$0xff]
    %v1093 = vld [vmem:[%s1091 + $0x8] sm:$0xff]
    %v1094 = vld [vmem:[%s1091 + $0x10] sm:$0xff]
    %v1095 = vld [vmem:[%s1091 + $0x18] sm:$0xff]
    %v1096 = vmul.f32 %v1084, %v1092
    %v1097 = vmul.f32 %v1086, %v1093
    %v1098 = vmul.f32 %v1088, %v1094
    %v1099 = vmul.f32 %v1090, %v1095
    %v1100 = vadd.f32 %v1016, %v1096
    %v1101 = vadd.f32 %v1017, %v1097
    %v1102 = vadd.f32 %v1018, %v1098
    %v1103 = vadd.f32 %v1019, %v1099
    %1104 = vrot.lane.b32.xlu0 %v516, 114
    %v1105 = vpop.permute.xlu0 %1104
    %1106 = vrot.lane.b32.xlu0 %v517, 114
    %v1107 = vpop.permute.xlu0 %1106
    %1108 = vrot.lane.b32.xlu0 %v518, 114
    %v1109 = vpop.permute.xlu0 %1108
    %1110 = vrot.lane.b32.xlu0 %v519, 114
    %v1111 = vpop.permute.xlu0 %1110
    %s1112 = scalar_lea.vmem [#allocation2], 928
    %v1113 = vld [vmem:[%s1112] sm:$0xff]
    %v1114 = vld [vmem:[%s1112 + $0x8] sm:$0xff]
    %v1115 = vld [vmem:[%s1112 + $0x10] sm:$0xff]
    %v1116 = vld [vmem:[%s1112 + $0x18] sm:$0xff]
    %v1117 = vmul.f32 %v1105, %v1113
    %v1118 = vmul.f32 %v1107, %v1114
    %v1119 = vmul.f32 %v1109, %v1115
    %v1120 = vmul.f32 %v1111, %v1116
    %v1121 = vadd.f32 %v1037, %v1117
    %v1122 = vadd.f32 %v1038, %v1118
    %v1123 = vadd.f32 %v1039, %v1119
    %v1124 = vadd.f32 %v1040, %v1120
    %1125 = vrot.lane.b32.xlu0 %v516, 113
    %v1126 = vpop.permute.xlu0 %1125
    %1127 = vrot.lane.b32.xlu0 %v517, 113
    %v1128 = vpop.permute.xlu0 %1127
    %1129 = vrot.lane.b32.xlu0 %v518, 113
    %v1130 = vpop.permute.xlu0 %1129
    %1131 = vrot.lane.b32.xlu0 %v519, 113
    %v1132 = vpop.permute.xlu0 %1131
    %s1133 = scalar_lea.vmem [#allocation2], 960
    %v1134 = vld [vmem:[%s1133] sm:$0xff]
    %v1135 = vld [vmem:[%s1133 + $0x8] sm:$0xff]
    %v1136 = vld [vmem:[%s1133 + $0x10] sm:$0xff]
    %v1137 = vld [vmem:[%s1133 + $0x18] sm:$0xff]
    %v1138 = vmul.f32 %v1126, %v1134
    %v1139 = vmul.f32 %v1128, %v1135
    %v1140 = vmul.f32 %v1130, %v1136
    %v1141 = vmul.f32 %v1132, %v1137
    %v1142 = vadd.f32 %v1058, %v1138
    %v1143 = vadd.f32 %v1059, %v1139
    %v1144 = vadd.f32 %v1060, %v1140
    %v1145 = vadd.f32 %v1061, %v1141
    %v1146 = vadd.f32 %v1100, %v1121
    %v1147 = vadd.f32 %v1101, %v1122
    %v1148 = vadd.f32 %v1102, %v1123
    %v1149 = vadd.f32 %v1103, %v1124
    %v1150 = vadd.f32 %v1142, %v1079
    %v1151 = vadd.f32 %v1143, %v1080
    %v1152 = vadd.f32 %v1144, %v1081
    %v1153 = vadd.f32 %v1145, %v1082
    %v1154 = vadd.f32 %v1146, %v1150
    %v1155 = vadd.f32 %v1147, %v1151
    %v1156 = vadd.f32 %v1148, %v1152
    %v1157 = vadd.f32 %v1149, %v1153
    %v1158 = vld [vmem:[%s4] sm:$0xff]
    %v1159 = vld [vmem:[%s4 + $0x8] sm:$0xff]
    %v1160 = vld [vmem:[%s4 + $0x10] sm:$0xff]
    %v1161 = vld [vmem:[%s4 + $0x18] sm:$0xff]
    %1163 = vset.pattern.permute.xlu0 0
    %1164 = vperm.xlu0 %1163, %v1158
    %v1165 = vpop.permute.xlu0 %1164
    %1168 = vset.pattern.permute.xlu0 0
    %1169 = vperm.xlu0 %1168, %v1159
    %v1170 = vpop.permute.xlu0 %1169
    %1173 = vset.pattern.permute.xlu0 0
    %1174 = vperm.xlu0 %1173, %v1160
    %v1175 = vpop.permute.xlu0 %1174
    %1178 = vset.pattern.permute.xlu0 0
    %1179 = vperm.xlu0 %1178, %v1161
    %v1180 = vpop.permute.xlu0 %1179
    %v1182 = vadd.f32 %v1154, %v1165
    %v1183 = vadd.f32 %v1155, %v1170
    %v1184 = vadd.f32 %v1156, %v1175
    %v1185 = vadd.f32 %v1157, %v1180
    %v1186 = vmul.f32 %v1182, 0.5
    %v1187 = vmul.f32 %v1183, 0.5
    %v1188 = vmul.f32 %v1184, 0.5
    %v1189 = vmul.f32 %v1185, 0.5
    %v1190 = vtanh.pop %v1186
    %v1191 = vtanh.pop %v1187
    %v1192 = vtanh.pop %v1188
    %v1193 = vtanh.pop %v1189
    %v1194 = vadd.f32 %v1190, 1.0
    %v1195 = vadd.f32 %v1191, 1.0
    %v1196 = vadd.f32 %v1192, 1.0
    %v1197 = vadd.f32 %v1193, 1.0
    %v1198 = vmul.f32 %v1194, 0.5
    %v1199 = vmul.f32 %v1195, 0.5
    %v1200 = vmul.f32 %v1196, 0.5
    %v1201 = vmul.f32 %v1197, 0.5
    %v1202 = vmul.f32 %v1182, %v1198
    %v1203 = vmul.f32 %v1183, %v1199
    %v1204 = vmul.f32 %v1184, %v1200
    %v1205 = vmul.f32 %v1185, %v1201
    %v1206 = vld [vmem:[%s5] sm:$0xff]
    %v1207 = vld [vmem:[%s5 + $0x8] sm:$0xff]
    %v1208 = vld [vmem:[%s6] sm:$0xff]
    %v1209 = vld [vmem:[%s6 + $0x8] sm:$0xff]
    %1211 = vset.pattern.permute.xlu0 0
    %1212 = vperm.xlu0 %1211, %v1208
    %v1213 = vpop.permute.xlu0 %1212
    %1216 = vset.pattern.permute.xlu0 0
    %1217 = vperm.xlu0 %1216, %v1209
    %v1218 = vpop.permute.xlu0 %1217
    %vm1220 = vcmask 261120
    %v1222 = vsel %vm1220, %v1206, 0
    %v1225 = vsel %vm1220, %v1207, 0
    %1227 = vmatprep.subr.mxu0 0.0
    %1228 = vmatpush1.msra.mxu0 %v1202
    %1229 = vmatprep.subr.mxu0 0.0
    %1230 = vmatpush1.msra.mxu0 %v1203
    %1231 = vmatprep.subr.mxu0 0.0
    %1232 = vmatpush1.msra.mxu0 %v1204
    %1233 = vmatprep.subr.mxu0 0.0
    %1234 = vmatpush1.msra.mxu0 %v1205
    %1235 = vmatprep.subr.mxu0 0.0
    %1236 = vmatpush1.msra.mxu0 0.0
    %1237 = vmatprep.subr.mxu0 0.0
    %1238 = vmatpush1.msra.mxu0 0.0
    %1239 = vmatprep.subr.mxu0 0.0
    %1240 = vmatpush1.msra.mxu0 0.0
    %1241 = vmatprep.subr.mxu0 0.0
    %1242 = vmatpush1.msra.mxu0 0.0
    %1243 = vmatprep.subr.mxu0 0.0
    %1244 = vmatpush1.msra.mxu0 0.0
    %1245 = vmatprep.subr.mxu0 0.0
    %1246 = vmatpush1.msra.mxu0 0.0
    %1247 = vmatprep.subr.mxu0 0.0
    %1248 = vmatpush1.msra.mxu0 0.0
    %1249 = vmatprep.subr.mxu0 0.0
    %1250 = vmatpush1.msra.mxu0 0.0
    %1251 = vmatprep.subr.mxu0 0.0
    %1252 = vmatpush1.msra.mxu0 0.0
    %1253 = vmatprep.subr.mxu0 0.0
    %1254 = vmatpush1.msra.mxu0 0.0
    %1255 = vmatprep.subr.mxu0 0.0
    %1256 = vmatpush1.msra.mxu0 0.0
    %1257 = vmatprep.subr.mxu0 0.0
    %1258 = vmatpush1.msra.mxu0 0.0
    %1259 = vmatprep.subr.mxu0 0.0
    %1260 = vmatpush1.msra.mxu0 0.0
    %1261 = vmatprep.subr.mxu0 0.0
    %1262 = vmatpush1.msra.mxu0 0.0
    %1263 = vmatprep.subr.mxu0 0.0
    %1264 = vmatpush1.msra.mxu0 0.0
    %1265 = vmatprep.subr.mxu0 0.0
    %1266 = vmatpush1.msra.mxu0 0.0
    %1267 = vmatprep.subr.mxu0 0.0
    %1268 = vmatpush1.msra.mxu0 0.0
    %1269 = vmatprep.subr.mxu0 0.0
    %1270 = vmatpush1.msra.mxu0 0.0
    %1271 = vmatprep.subr.mxu0 0.0
    %1272 = vmatpush1.msra.mxu0 0.0
    %1273 = vmatprep.subr.mxu0 0.0
    %1274 = vmatpush1.msra.mxu0 0.0
    %1275 = vmatprep.subr.mxu0 0.0
    %1276 = vmatpush1.msra.mxu0 0.0
    %1277 = vmatprep.subr.mxu0 0.0
    %1278 = vmatpush1.msra.mxu0 0.0
    %1279 = vmatprep.subr.mxu0 0.0
    %1280 = vmatpush1.msra.mxu0 0.0
    %1281 = vmatprep.subr.mxu0 0.0
    %1282 = vmatpush1.msra.mxu0 0.0
    %1283 = vmatprep.subr.mxu0 0.0
    %1284 = vmatpush1.msra.mxu0 0.0
    %1285 = vmatprep.subr.mxu0 0.0
    %1286 = vmatpush1.msra.mxu0 0.0
    %1287 = vmatprep.subr.mxu0 0.0
    %1288 = vmatpush1.msra.mxu0 0.0
    %1289 = vmatprep.subr.mxu0 0.0
    %1290 = vmatpush1.msra.mxu0 0.0
    %1291 = vmatprep.mubr.f32.mxu0 0.0
    %1292 = vmatmul.mubr.f32.gmra.mrb[0].mxu0 %v1222
    %v1293 = vpop.f32.mrb[0].mxu0
    %v1294 = vadd.f32 %v1213, %v1293
    %v1295 = vpop.f32.mrb[0].mxu0
    %1296 = vmatprep.mubr.f32.mxu0 0.0
    %1297 = vmatmul.mubr.f32.gmra.mrb[0].mxu0 %v1225
    %v1298 = vpop.f32.mrb[0].mxu0
    %v1299 = vadd.f32 %v1218, %v1298
    %v1300 = vpop.f32.mrb[0].mxu0
    %1301 = vdwg.mxu0
    %1302 = vst [vmem:[#allocation5] sm:$0xff] %v1294
    %1303 = vst [vmem:[#allocation5 + $0x8] sm:$0xff] %v1299
    // Predicated region
    $region34: #{tpu_custom_call.1} parent=1 // pred_check
      _
    $region35: #{tpu_custom_call.1} parent=1 // pred_check_branch
      %1305 = sbr.rel (0) target = $region37
    $region36: #{tpu_custom_call.1} parent=1 // pred_region
      %s1307 = ssub.s32 256, 256
      %1308 = vsyncadd [#allocation4], %s1307
      %s1309 = sshll.u32 [#allocation5], 4
      %s1310 = int_to_ptr.vmem [resolvable:$true] %s1309
      %1315 = dma.vmem_to_hbm [thread:$0]  %s1310, 256, %s7, [#allocation4], 128, 128, 8
    $region37: #{tpu_custom_call.1} parent=1 // pred_fallthru
      _
    // Predicated region
    $region38: #{tpu_custom_call.1} parent=1 // pred_check
      _
    $region39: #{tpu_custom_call.1} parent=1 // pred_check_branch
      %1317 = sbr.rel (0) target = $region41
    $region40: #{tpu_custom_call.1} parent=1 // pred_region
      %1318 = dma.done [#allocation4], 256
    $region41: #{tpu_custom_call.1} parent=1 // pred_fallthru
      _
    %1319 = vsyncpa [#allocation3], 1
    %1320 = vsyncpa [#allocation4], 1

</llo_original>
